<compile_context>
chip_gen: v7x
topology: tpu7x:2x2x1
jax: 0.10.0
libtpu: 0.0.40
codegen_flags: <defaults>
</compile_context>

<pallas_src>
import jax
import jax.numpy as jnp
from jax.experimental import pallas as pl
from jax.experimental.pallas import tpu as pltpu

HIDDEN = 12  # input_size == hidden_size == num_classes == 12


def _make_kernel(B, T):
    H = HIDDEN

    def kernel(x_ref, wih_ref, whh_ref, bias_ref, wout_ref, bout_ref, out_ref,
               gx_ref, hs_ref):
        # x_ref   : (B, T, 12)   input, batch_first (as given by the caller)
        # wih_ref : (12, 48)     W_ih^T  (PyTorch gate order i, f, g, o)
        # whh_ref : (12, 48)     W_hh^T
        # bias_ref: (1, 48)      b_ih + b_hh
        # wout_ref: (12, 12)     W_out^T
        # bout_ref: (1, 12)      b_out
        # out_ref : (B, T, 12)   ReLU(Linear(h_t)), batch_first
        # gx_ref  : (B*T, 48)    scratch: precomputed input projection (row b*T+t)
        # hs_ref  : (T*B, 12)    scratch: hidden states, time-major (row t*B+b)

        wih = wih_ref[...]
        bias = bias_ref[...]

        # ---- Preamble (off the serial chain): fused input projection. -----
        # One small MXU matmul per batch element, written as aligned (T, 48)
        # blocks.  Replaces the wrapper-side einsum + HBM round trip of gx.
        for b in range(B):
            gx_ref[pl.ds(b * T, T), :] = (
                jnp.dot(x_ref[b], wih, preferred_element_type=jnp.float32)
                + bias)

        whh = whh_ref[...]  # loaded once, resident across all steps
        h = jnp.zeros((B, H), jnp.float32)
        c = jnp.zeros((B, H), jnp.float32)

        # ---- Recurrence: statically unrolled over T. -----------------------
        for t in range(T):
            # Rows {b*T + t}: strided sublane load; independent of the carries,
            # so the scheduler can hoist it off the serial dependency chain.
            gx_t = gx_ref[pl.ds(t, B, stride=T), :]
            # Single MXU op left on the serial path.
            # TODO(synk): the (B,12)@(12,48) matmul keeps the full MXU
            # fill+drain latency on the chain each step; a VPU multiply /
            # tree-add reformulation may win but needs bundle-dump evidence.
            gates = gx_t + jnp.dot(h, whh, preferred_element_type=jnp.float32)
            # 2 EUP pushes per step: sigmoid/tanh applied once to the whole
            # 48-lane gate vector, gates sliced out afterwards.  The 3 off-band
            # slices (f, g, o) each lower to an XLU band-rotate; with 12-lane
            # carries this is structural, and the rotates run in parallel on
            # the XLU so only ~1 rotate of latency lands on the chain.
            # TODO(synk): experiment with gate-column permutation /
            # band-replicated c to shave the remaining rotate (verify on a
            # bundle dump before committing).
            sig = jax.nn.sigmoid(gates)
            tnh = jnp.tanh(gates)
            i_g = sig[:, 0 * H:1 * H]
            f_g = sig[:, 1 * H:2 * H]
            g_g = tnh[:, 2 * H:3 * H]
            o_g = sig[:, 3 * H:4 * H]
            c = f_g * c + i_g * g_g
            h = o_g * jnp.tanh(c)
            # Stash h (small off-chain store); output head is applied after
            # the loop.  Kept as a VMEM scratch (instead of a 16-piece vreg
            # concatenate) for robust lowering.
            hs_ref[pl.ds(t * B, B), :] = h

        # ---- Epilogue: fused output head + batch-first store. --------------
        wout = wout_ref[...]
        bout = bout_ref[...]
        for b in range(B):
            # Sequence b of the time-major hidden states: strided sublane load.
            hb = hs_ref[pl.ds(b, T, stride=B), :]                   # (T, 12)
            yb = jnp.dot(hb, wout, preferred_element_type=jnp.float32) + bout
            # Full (T, 12) sublane-aligned block store, already batch_first.
            out_ref[b] = jnp.maximum(yb, 0.0).astype(out_ref.dtype)

    return kernel


@jax.jit
def lstm_generator_forward(x, params):
    """x: (B, T, 12) float32, batch_first like the PyTorch module."""
    B, T, F = x.shape
    assert F == HIDDEN
    x = x.astype(jnp.float32)

    wih_t = params["w_ih"].T                                   # (12, 48)
    whh_t = params["w_hh"].T                                   # (12, 48)
    bias = (params["b_ih"] + params["b_hh"]).reshape(1, 4 * HIDDEN)
    wout_t = params["w_out"].T                                 # (12, 12)
    bout = params["b_out"].reshape(1, HIDDEN)                  # (1, 12)

    vmem_spec = pl.BlockSpec(memory_space=pltpu.MemorySpace.VMEM)
    # TODO(synk): for long sequences, tile T with an "arbitrary" grid axis
    # (carry h/c in scratch) instead of whole-sequence VMEM residency,
    # especially on v7x (64 MiB VMEM).
    # TODO(synk): on v7x a parallel grid axis over the batch would use both
    # TensorCores; skipped here because per-core blocks of B=1 are tiny and it
    # adds invocation overhead on v5e/v6e (single TC).
    return pl.pallas_call(
        _make_kernel(B, T),
        out_shape=jax.ShapeDtypeStruct((B, T, HIDDEN), jnp.float32),
        in_specs=[vmem_spec] * 6,
        out_specs=vmem_spec,
        scratch_shapes=[
            pltpu.VMEM((B * T, 4 * HIDDEN), jnp.float32),   # gx
            pltpu.VMEM((T * B, HIDDEN), jnp.float32),       # hidden states
        ],
    )(x, wih_t, whh_t, bias, wout_t, bout)


def init_params(key):
    """Deterministic init, PyTorch-style uniform(-1/sqrt(H), 1/sqrt(H))."""
    bound = 1.0 / jnp.sqrt(jnp.float32(HIDDEN))
    ks = jax.random.split(key, 6)
    u = lambda k, shape: jax.random.uniform(
        k, shape, jnp.float32, minval=-bound, maxval=bound)
    return {
        "w_ih": u(ks[0], (4 * HIDDEN, HIDDEN)),   # gate order i, f, g, o
        "w_hh": u(ks[1], (4 * HIDDEN, HIDDEN)),
        "b_ih": u(ks[2], (4 * HIDDEN,)),
        "b_hh": u(ks[3], (4 * HIDDEN,)),
        "w_out": u(ks[4], (HIDDEN, HIDDEN)),
        "b_out": u(ks[5], (HIDDEN,)),
    }


def reference_forward(x, params):
    """Pure-JAX reference of the same forward pass (for validation)."""
    B, T, F = x.shape
    H = HIDDEN
    wih_t = params["w_ih"].T
    whh_t = params["w_hh"].T
    b = params["b_ih"] + params["b_hh"]

    def step(carry, x_t):
        h, c = carry
        gates = x_t @ wih_t + h @ whh_t + b
        i_g = jax.nn.sigmoid(gates[:, 0 * H:1 * H])
        f_g = jax.nn.sigmoid(gates[:, 1 * H:2 * H])
        g_g = jnp.tanh(gates[:, 2 * H:3 * H])
        o_g = jax.nn.sigmoid(gates[:, 3 * H:4 * H])
        c = f_g * c + i_g * g_g
        h = o_g * jnp.tanh(c)
        return (h, c), h

    h0 = jnp.zeros((B, H), jnp.float32)
    c0 = jnp.zeros((B, H), jnp.float32)
    _, hs = jax.lax.scan(step, (h0, c0), jnp.transpose(x, (1, 0, 2)))
    hs = jnp.transpose(hs, (1, 0, 2))  # (B, T, H)
    y = hs @ params["w_out"].T + params["b_out"]
    return jnp.maximum(y, 0.0)


if __name__ == "__main__":
    key = jax.random.PRNGKey(0)
    k_param, k_x = jax.random.split(key)

    B, T = 2, 8  # small batch / sequence length; feature dim fixed to 12
    params = init_params(k_param)
    x = jax.random.normal(k_x, (B, T, HIDDEN), dtype=jnp.float32)

    out = lstm_generator_forward(x, params)
    out = jax.block_until_ready(out)

    ref = reference_forward(x, params)
    assert out.shape == (B, T, HIDDEN)
    assert jnp.allclose(out, ref, atol=1e-4, rtol=1e-4)

    print("KERNEL_OK")
</pallas_src>

<mosaic_0001>
module attributes {stable_mosaic.version = 11 : i64} {
  func.func @kernel(%arg0: memref<2x8x12xf32, #tpu.memory_space<vmem>>, %arg1: memref<12x48xf32, #tpu.memory_space<vmem>>, %arg2: memref<12x48xf32, #tpu.memory_space<vmem>>, %arg3: memref<1x48xf32, #tpu.memory_space<vmem>>, %arg4: memref<12x12xf32, #tpu.memory_space<vmem>>, %arg5: memref<1x12xf32, #tpu.memory_space<vmem>>, %arg6: memref<2x8x12xf32, #tpu.memory_space<vmem>>, %arg7: memref<16x48xf32, #tpu.memory_space<vmem>>, %arg8: memref<16x12xf32, #tpu.memory_space<vmem>>) attributes {dimension_semantics = [], scalar_prefetch = 0 : i64, scratch_operands = 2 : i64, tpu.core_type = #tpu.core_type<tc>} {
    %c0 = arith.constant 0 : index
    %c0_0 = arith.constant 0 : index
    %0 = vector.load %arg1[%c0, %c0_0] : memref<12x48xf32, #tpu.memory_space<vmem>>, vector<12x48xf32>
    %c0_1 = arith.constant 0 : index
    %c0_2 = arith.constant 0 : index
    %1 = vector.load %arg3[%c0_1, %c0_2] : memref<1x48xf32, #tpu.memory_space<vmem>>, vector<1x48xf32>
    %c0_3 = arith.constant 0 : index
    %c0_4 = arith.constant 0 : index
    %c0_5 = arith.constant 0 : index
    %2 = vector.load %arg0[%c0_3, %c0_4, %c0_5] : memref<2x8x12xf32, #tpu.memory_space<vmem>>, vector<1x8x12xf32>
    %3 = vector.shape_cast %2 : vector<1x8x12xf32> to vector<8x12xf32>
    %cst = arith.constant dense<0.000000e+00> : vector<8x48xf32>
    %4 = tpu.matmul %3, %0, %cst {dimension_numbers = #tpu.dot_dimension_numbers<[1], [0], [0], [1], [0, 0, 1, 1], [], []>} : vector<8x12xf32>, vector<12x48xf32>, vector<8x48xf32> -> vector<8x48xf32>
    %5 = vector.broadcast %1 : vector<1x48xf32> to vector<8x48xf32>
    %6 = arith.addf %4, %5 : vector<8x48xf32>
    %c0_6 = arith.constant 0 : index
    %c0_7 = arith.constant 0 : index
    %7 = vector.load %arg7[%c0_6, %c0_7] : memref<16x48xf32, #tpu.memory_space<vmem>>, vector<8x48xf32>
    tpu.vector_store %arg7[%c0_6, %c0_7], %6 {strides = array<i32>} : memref<16x48xf32, #tpu.memory_space<vmem>>, vector<8x48xf32>,
    %c1 = arith.constant 1 : index
    %c0_8 = arith.constant 0 : index
    %c0_9 = arith.constant 0 : index
    %8 = vector.load %arg0[%c1, %c0_8, %c0_9] : memref<2x8x12xf32, #tpu.memory_space<vmem>>, vector<1x8x12xf32>
    %9 = vector.shape_cast %8 : vector<1x8x12xf32> to vector<8x12xf32>
    %cst_10 = arith.constant dense<0.000000e+00> : vector<8x48xf32>
    %10 = tpu.matmul %9, %0, %cst_10 {dimension_numbers = #tpu.dot_dimension_numbers<[1], [0], [0], [1], [0, 0, 1, 1], [], []>} : vector<8x12xf32>, vector<12x48xf32>, vector<8x48xf32> -> vector<8x48xf32>
    %11 = vector.broadcast %1 : vector<1x48xf32> to vector<8x48xf32>
    %12 = arith.addf %10, %11 : vector<8x48xf32>
    %c8 = arith.constant 8 : index
    %c0_11 = arith.constant 0 : index
    %13 = vector.load %arg7[%c8, %c0_11] : memref<16x48xf32, #tpu.memory_space<vmem>>, vector<8x48xf32>
    tpu.vector_store %arg7[%c8, %c0_11], %12 {strides = array<i32>} : memref<16x48xf32, #tpu.memory_space<vmem>>, vector<8x48xf32>,
    %c0_12 = arith.constant 0 : index
    %c0_13 = arith.constant 0 : index
    %14 = vector.load %arg2[%c0_12, %c0_13] : memref<12x48xf32, #tpu.memory_space<vmem>>, vector<12x48xf32>
    %cst_14 = arith.constant 0.000000e+00 : f32
    %15 = vector.broadcast %cst_14 : f32 to vector<2x12xf32>
    %cst_15 = arith.constant 0.000000e+00 : f32
    %16 = vector.broadcast %cst_15 : f32 to vector<2x12xf32>
    %c0_16 = arith.constant 0 : index
    %c0_17 = arith.constant 0 : index
    %17 = tpu.strided_load %arg7[%c0_16, %c0_17] {strides = array<i32: 8, 1>} : memref<16x48xf32, #tpu.memory_space<vmem>>, vector<2x48xf32>
    %cst_18 = arith.constant dense<0.000000e+00> : vector<2x48xf32>
    %18 = tpu.matmul %15, %14, %cst_18 {dimension_numbers = #tpu.dot_dimension_numbers<[1], [0], [0], [1], [0, 0, 1, 1], [], []>} : vector<2x12xf32>, vector<12x48xf32>, vector<2x48xf32> -> vector<2x48xf32>
    %19 = arith.addf %17, %18 : vector<2x48xf32>
    %20 = arith.negf %19 : vector<2x48xf32>
    %21 = math.exp %20 : vector<2x48xf32>
    %cst_19 = arith.constant 1.000000e+00 : f32
    %22 = vector.broadcast %cst_19 : f32 to vector<2x48xf32>
    %23 = arith.addf %22, %21 : vector<2x48xf32>
    %24 = arith.divf %22, %23 : vector<2x48xf32>
    %25 = math.tanh %19 : vector<2x48xf32>
    %26 = vector.extract_strided_slice %24 {offsets = [0, 0], sizes = [2, 12], strides = [1, 1]} : vector<2x48xf32> to vector<2x12xf32>
    %27 = vector.extract_strided_slice %24 {offsets = [0, 12], sizes = [2, 12], strides = [1, 1]} : vector<2x48xf32> to vector<2x12xf32>
    %28 = vector.extract_strided_slice %25 {offsets = [0, 24], sizes = [2, 12], strides = [1, 1]} : vector<2x48xf32> to vector<2x12xf32>
    %29 = vector.extract_strided_slice %24 {offsets = [0, 36], sizes = [2, 12], strides = [1, 1]} : vector<2x48xf32> to vector<2x12xf32>
    %30 = arith.mulf %27, %16 : vector<2x12xf32>
    %31 = arith.mulf %26, %28 : vector<2x12xf32>
    %32 = arith.addf %30, %31 : vector<2x12xf32>
    %33 = math.tanh %32 : vector<2x12xf32>
    %34 = arith.mulf %29, %33 : vector<2x12xf32>
    %c0_20 = arith.constant 0 : index
    %c0_21 = arith.constant 0 : index
    %35 = vector.load %arg8[%c0_20, %c0_21] : memref<16x12xf32, #tpu.memory_space<vmem>>, vector<2x12xf32>
    tpu.vector_store %arg8[%c0_20, %c0_21], %34 {strides = array<i32>} : memref<16x12xf32, #tpu.memory_space<vmem>>, vector<2x12xf32>,
    %c1_22 = arith.constant 1 : index
    %c0_23 = arith.constant 0 : index
    %36 = tpu.strided_load %arg7[%c1_22, %c0_23] {strides = array<i32: 8, 1>} : memref<16x48xf32, #tpu.memory_space<vmem>>, vector<2x48xf32>
    %cst_24 = arith.constant dense<0.000000e+00> : vector<2x48xf32>
    %37 = tpu.matmul %34, %14, %cst_24 {dimension_numbers = #tpu.dot_dimension_numbers<[1], [0], [0], [1], [0, 0, 1, 1], [], []>} : vector<2x12xf32>, vector<12x48xf32>, vector<2x48xf32> -> vector<2x48xf32>
    %38 = arith.addf %36, %37 : vector<2x48xf32>
    %39 = arith.negf %38 : vector<2x48xf32>
    %40 = math.exp %39 : vector<2x48xf32>
    %cst_25 = arith.constant 1.000000e+00 : f32
    %41 = vector.broadcast %cst_25 : f32 to vector<2x48xf32>
    %42 = arith.addf %41, %40 : vector<2x48xf32>
    %43 = arith.divf %41, %42 : vector<2x48xf32>
    %44 = math.tanh %38 : vector<2x48xf32>
    %45 = vector.extract_strided_slice %43 {offsets = [0, 0], sizes = [2, 12], strides = [1, 1]} : vector<2x48xf32> to vector<2x12xf32>
    %46 = vector.extract_strided_slice %43 {offsets = [0, 12], sizes = [2, 12], strides = [1, 1]} : vector<2x48xf32> to vector<2x12xf32>
    %47 = vector.extract_strided_slice %44 {offsets = [0, 24], sizes = [2, 12], strides = [1, 1]} : vector<2x48xf32> to vector<2x12xf32>
    %48 = vector.extract_strided_slice %43 {offsets = [0, 36], sizes = [2, 12], strides = [1, 1]} : vector<2x48xf32> to vector<2x12xf32>
    %49 = arith.mulf %46, %32 : vector<2x12xf32>
    %50 = arith.mulf %45, %47 : vector<2x12xf32>
    %51 = arith.addf %49, %50 : vector<2x12xf32>
    %52 = math.tanh %51 : vector<2x12xf32>
    %53 = arith.mulf %48, %52 : vector<2x12xf32>
    %c2 = arith.constant 2 : index
    %c0_26 = arith.constant 0 : index
    %54 = vector.load %arg8[%c2, %c0_26] : memref<16x12xf32, #tpu.memory_space<vmem>>, vector<2x12xf32>
    tpu.vector_store %arg8[%c2, %c0_26], %53 {strides = array<i32>} : memref<16x12xf32, #tpu.memory_space<vmem>>, vector<2x12xf32>,
    %c2_27 = arith.constant 2 : index
    %c0_28 = arith.constant 0 : index
    %55 = tpu.strided_load %arg7[%c2_27, %c0_28] {strides = array<i32: 8, 1>} : memref<16x48xf32, #tpu.memory_space<vmem>>, vector<2x48xf32>
    %cst_29 = arith.constant dense<0.000000e+00> : vector<2x48xf32>
    %56 = tpu.matmul %53, %14, %cst_29 {dimension_numbers = #tpu.dot_dimension_numbers<[1], [0], [0], [1], [0, 0, 1, 1], [], []>} : vector<2x12xf32>, vector<12x48xf32>, vector<2x48xf32> -> vector<2x48xf32>
    %57 = arith.addf %55, %56 : vector<2x48xf32>
    %58 = arith.negf %57 : vector<2x48xf32>
    %59 = math.exp %58 : vector<2x48xf32>
    %cst_30 = arith.constant 1.000000e+00 : f32
    %60 = vector.broadcast %cst_30 : f32 to vector<2x48xf32>
    %61 = arith.addf %60, %59 : vector<2x48xf32>
    %62 = arith.divf %60, %61 : vector<2x48xf32>
    %63 = math.tanh %57 : vector<2x48xf32>
    %64 = vector.extract_strided_slice %62 {offsets = [0, 0], sizes = [2, 12], strides = [1, 1]} : vector<2x48xf32> to vector<2x12xf32>
    %65 = vector.extract_strided_slice %62 {offsets = [0, 12], sizes = [2, 12], strides = [1, 1]} : vector<2x48xf32> to vector<2x12xf32>
    %66 = vector.extract_strided_slice %63 {offsets = [0, 24], sizes = [2, 12], strides = [1, 1]} : vector<2x48xf32> to vector<2x12xf32>
    %67 = vector.extract_strided_slice %62 {offsets = [0, 36], sizes = [2, 12], strides = [1, 1]} : vector<2x48xf32> to vector<2x12xf32>
    %68 = arith.mulf %65, %51 : vector<2x12xf32>
    %69 = arith.mulf %64, %66 : vector<2x12xf32>
    %70 = arith.addf %68, %69 : vector<2x12xf32>
    %71 = math.tanh %70 : vector<2x12xf32>
    %72 = arith.mulf %67, %71 : vector<2x12xf32>
    %c4 = arith.constant 4 : index
    %c0_31 = arith.constant 0 : index
    %73 = vector.load %arg8[%c4, %c0_31] : memref<16x12xf32, #tpu.memory_space<vmem>>, vector<2x12xf32>
    tpu.vector_store %arg8[%c4, %c0_31], %72 {strides = array<i32>} : memref<16x12xf32, #tpu.memory_space<vmem>>, vector<2x12xf32>,
    %c3 = arith.constant 3 : index
    %c0_32 = arith.constant 0 : index
    %74 = tpu.strided_load %arg7[%c3, %c0_32] {strides = array<i32: 8, 1>} : memref<16x48xf32, #tpu.memory_space<vmem>>, vector<2x48xf32>
    %cst_33 = arith.constant dense<0.000000e+00> : vector<2x48xf32>
    %75 = tpu.matmul %72, %14, %cst_33 {dimension_numbers = #tpu.dot_dimension_numbers<[1], [0], [0], [1], [0, 0, 1, 1], [], []>} : vector<2x12xf32>, vector<12x48xf32>, vector<2x48xf32> -> vector<2x48xf32>
    %76 = arith.addf %74, %75 : vector<2x48xf32>
    %77 = arith.negf %76 : vector<2x48xf32>
    %78 = math.exp %77 : vector<2x48xf32>
    %cst_34 = arith.constant 1.000000e+00 : f32
    %79 = vector.broadcast %cst_34 : f32 to vector<2x48xf32>
    %80 = arith.addf %79, %78 : vector<2x48xf32>
    %81 = arith.divf %79, %80 : vector<2x48xf32>
    %82 = math.tanh %76 : vector<2x48xf32>
    %83 = vector.extract_strided_slice %81 {offsets = [0, 0], sizes = [2, 12], strides = [1, 1]} : vector<2x48xf32> to vector<2x12xf32>
    %84 = vector.extract_strided_slice %81 {offsets = [0, 12], sizes = [2, 12], strides = [1, 1]} : vector<2x48xf32> to vector<2x12xf32>
    %85 = vector.extract_strided_slice %82 {offsets = [0, 24], sizes = [2, 12], strides = [1, 1]} : vector<2x48xf32> to vector<2x12xf32>
    %86 = vector.extract_strided_slice %81 {offsets = [0, 36], sizes = [2, 12], strides = [1, 1]} : vector<2x48xf32> to vector<2x12xf32>
    %87 = arith.mulf %84, %70 : vector<2x12xf32>
    %88 = arith.mulf %83, %85 : vector<2x12xf32>
    %89 = arith.addf %87, %88 : vector<2x12xf32>
    %90 = math.tanh %89 : vector<2x12xf32>
    %91 = arith.mulf %86, %90 : vector<2x12xf32>
    %c6 = arith.constant 6 : index
    %c0_35 = arith.constant 0 : index
    %92 = vector.load %arg8[%c6, %c0_35] : memref<16x12xf32, #tpu.memory_space<vmem>>, vector<2x12xf32>
    tpu.vector_store %arg8[%c6, %c0_35], %91 {strides = array<i32>} : memref<16x12xf32, #tpu.memory_space<vmem>>, vector<2x12xf32>,
    %c4_36 = arith.constant 4 : index
    %c0_37 = arith.constant 0 : index
    %93 = tpu.strided_load %arg7[%c4_36, %c0_37] {strides = array<i32: 8, 1>} : memref<16x48xf32, #tpu.memory_space<vmem>>, vector<2x48xf32>
    %cst_38 = arith.constant dense<0.000000e+00> : vector<2x48xf32>
    %94 = tpu.matmul %91, %14, %cst_38 {dimension_numbers = #tpu.dot_dimension_numbers<[1], [0], [0], [1], [0, 0, 1, 1], [], []>} : vector<2x12xf32>, vector<12x48xf32>, vector<2x48xf32> -> vector<2x48xf32>
    %95 = arith.addf %93, %94 : vector<2x48xf32>
    %96 = arith.negf %95 : vector<2x48xf32>
    %97 = math.exp %96 : vector<2x48xf32>
    %cst_39 = arith.constant 1.000000e+00 : f32
    %98 = vector.broadcast %cst_39 : f32 to vector<2x48xf32>
    %99 = arith.addf %98, %97 : vector<2x48xf32>
    %100 = arith.divf %98, %99 : vector<2x48xf32>
    %101 = math.tanh %95 : vector<2x48xf32>
    %102 = vector.extract_strided_slice %100 {offsets = [0, 0], sizes = [2, 12], strides = [1, 1]} : vector<2x48xf32> to vector<2x12xf32>
    %103 = vector.extract_strided_slice %100 {offsets = [0, 12], sizes = [2, 12], strides = [1, 1]} : vector<2x48xf32> to vector<2x12xf32>
    %104 = vector.extract_strided_slice %101 {offsets = [0, 24], sizes = [2, 12], strides = [1, 1]} : vector<2x48xf32> to vector<2x12xf32>
    %105 = vector.extract_strided_slice %100 {offsets = [0, 36], sizes = [2, 12], strides = [1, 1]} : vector<2x48xf32> to vector<2x12xf32>
    %106 = arith.mulf %103, %89 : vector<2x12xf32>
    %107 = arith.mulf %102, %104 : vector<2x12xf32>
    %108 = arith.addf %106, %107 : vector<2x12xf32>
    %109 = math.tanh %108 : vector<2x12xf32>
    %110 = arith.mulf %105, %109 : vector<2x12xf32>
    %c8_40 = arith.constant 8 : index
    %c0_41 = arith.constant 0 : index
    %111 = vector.load %arg8[%c8_40, %c0_41] : memref<16x12xf32, #tpu.memory_space<vmem>>, vector<2x12xf32>
    tpu.vector_store %arg8[%c8_40, %c0_41], %110 {strides = array<i32>} : memref<16x12xf32, #tpu.memory_space<vmem>>, vector<2x12xf32>,
    %c5 = arith.constant 5 : index
    %c0_42 = arith.constant 0 : index
    %112 = tpu.strided_load %arg7[%c5, %c0_42] {strides = array<i32: 8, 1>} : memref<16x48xf32, #tpu.memory_space<vmem>>, vector<2x48xf32>
    %cst_43 = arith.constant dense<0.000000e+00> : vector<2x48xf32>
    %113 = tpu.matmul %110, %14, %cst_43 {dimension_numbers = #tpu.dot_dimension_numbers<[1], [0], [0], [1], [0, 0, 1, 1], [], []>} : vector<2x12xf32>, vector<12x48xf32>, vector<2x48xf32> -> vector<2x48xf32>
    %114 = arith.addf %112, %113 : vector<2x48xf32>
    %115 = arith.negf %114 : vector<2x48xf32>
    %116 = math.exp %115 : vector<2x48xf32>
    %cst_44 = arith.constant 1.000000e+00 : f32
    %117 = vector.broadcast %cst_44 : f32 to vector<2x48xf32>
    %118 = arith.addf %117, %116 : vector<2x48xf32>
    %119 = arith.divf %117, %118 : vector<2x48xf32>
    %120 = math.tanh %114 : vector<2x48xf32>
    %121 = vector.extract_strided_slice %119 {offsets = [0, 0], sizes = [2, 12], strides = [1, 1]} : vector<2x48xf32> to vector<2x12xf32>
    %122 = vector.extract_strided_slice %119 {offsets = [0, 12], sizes = [2, 12], strides = [1, 1]} : vector<2x48xf32> to vector<2x12xf32>
    %123 = vector.extract_strided_slice %120 {offsets = [0, 24], sizes = [2, 12], strides = [1, 1]} : vector<2x48xf32> to vector<2x12xf32>
    %124 = vector.extract_strided_slice %119 {offsets = [0, 36], sizes = [2, 12], strides = [1, 1]} : vector<2x48xf32> to vector<2x12xf32>
    %125 = arith.mulf %122, %108 : vector<2x12xf32>
    %126 = arith.mulf %121, %123 : vector<2x12xf32>
    %127 = arith.addf %125, %126 : vector<2x12xf32>
    %128 = math.tanh %127 : vector<2x12xf32>
    %129 = arith.mulf %124, %128 : vector<2x12xf32>
    %c10 = arith.constant 10 : index
    %c0_45 = arith.constant 0 : index
    %130 = vector.load %arg8[%c10, %c0_45] : memref<16x12xf32, #tpu.memory_space<vmem>>, vector<2x12xf32>
    tpu.vector_store %arg8[%c10, %c0_45], %129 {strides = array<i32>} : memref<16x12xf32, #tpu.memory_space<vmem>>, vector<2x12xf32>,
    %c6_46 = arith.constant 6 : index
    %c0_47 = arith.constant 0 : index
    %131 = tpu.strided_load %arg7[%c6_46, %c0_47] {strides = array<i32: 8, 1>} : memref<16x48xf32, #tpu.memory_space<vmem>>, vector<2x48xf32>
    %cst_48 = arith.constant dense<0.000000e+00> : vector<2x48xf32>
    %132 = tpu.matmul %129, %14, %cst_48 {dimension_numbers = #tpu.dot_dimension_numbers<[1], [0], [0], [1], [0, 0, 1, 1], [], []>} : vector<2x12xf32>, vector<12x48xf32>, vector<2x48xf32> -> vector<2x48xf32>
    %133 = arith.addf %131, %132 : vector<2x48xf32>
    %134 = arith.negf %133 : vector<2x48xf32>
    %135 = math.exp %134 : vector<2x48xf32>
    %cst_49 = arith.constant 1.000000e+00 : f32
    %136 = vector.broadcast %cst_49 : f32 to vector<2x48xf32>
    %137 = arith.addf %136, %135 : vector<2x48xf32>
    %138 = arith.divf %136, %137 : vector<2x48xf32>
    %139 = math.tanh %133 : vector<2x48xf32>
    %140 = vector.extract_strided_slice %138 {offsets = [0, 0], sizes = [2, 12], strides = [1, 1]} : vector<2x48xf32> to vector<2x12xf32>
    %141 = vector.extract_strided_slice %138 {offsets = [0, 12], sizes = [2, 12], strides = [1, 1]} : vector<2x48xf32> to vector<2x12xf32>
    %142 = vector.extract_strided_slice %139 {offsets = [0, 24], sizes = [2, 12], strides = [1, 1]} : vector<2x48xf32> to vector<2x12xf32>
    %143 = vector.extract_strided_slice %138 {offsets = [0, 36], sizes = [2, 12], strides = [1, 1]} : vector<2x48xf32> to vector<2x12xf32>
    %144 = arith.mulf %141, %127 : vector<2x12xf32>
    %145 = arith.mulf %140, %142 : vector<2x12xf32>
    %146 = arith.addf %144, %145 : vector<2x12xf32>
    %147 = math.tanh %146 : vector<2x12xf32>
    %148 = arith.mulf %143, %147 : vector<2x12xf32>
    %c12 = arith.constant 12 : index
    %c0_50 = arith.constant 0 : index
    %149 = vector.load %arg8[%c12, %c0_50] : memref<16x12xf32, #tpu.memory_space<vmem>>, vector<2x12xf32>
    tpu.vector_store %arg8[%c12, %c0_50], %148 {strides = array<i32>} : memref<16x12xf32, #tpu.memory_space<vmem>>, vector<2x12xf32>,
    %c7 = arith.constant 7 : index
    %c0_51 = arith.constant 0 : index
    %150 = tpu.strided_load %arg7[%c7, %c0_51] {strides = array<i32: 8, 1>} : memref<16x48xf32, #tpu.memory_space<vmem>>, vector<2x48xf32>
    %cst_52 = arith.constant dense<0.000000e+00> : vector<2x48xf32>
    %151 = tpu.matmul %148, %14, %cst_52 {dimension_numbers = #tpu.dot_dimension_numbers<[1], [0], [0], [1], [0, 0, 1, 1], [], []>} : vector<2x12xf32>, vector<12x48xf32>, vector<2x48xf32> -> vector<2x48xf32>
    %152 = arith.addf %150, %151 : vector<2x48xf32>
    %153 = arith.negf %152 : vector<2x48xf32>
    %154 = math.exp %153 : vector<2x48xf32>
    %cst_53 = arith.constant 1.000000e+00 : f32
    %155 = vector.broadcast %cst_53 : f32 to vector<2x48xf32>
    %156 = arith.addf %155, %154 : vector<2x48xf32>
    %157 = arith.divf %155, %156 : vector<2x48xf32>
    %158 = math.tanh %152 : vector<2x48xf32>
    %159 = vector.extract_strided_slice %157 {offsets = [0, 0], sizes = [2, 12], strides = [1, 1]} : vector<2x48xf32> to vector<2x12xf32>
    %160 = vector.extract_strided_slice %157 {offsets = [0, 12], sizes = [2, 12], strides = [1, 1]} : vector<2x48xf32> to vector<2x12xf32>
    %161 = vector.extract_strided_slice %158 {offsets = [0, 24], sizes = [2, 12], strides = [1, 1]} : vector<2x48xf32> to vector<2x12xf32>
    %162 = vector.extract_strided_slice %157 {offsets = [0, 36], sizes = [2, 12], strides = [1, 1]} : vector<2x48xf32> to vector<2x12xf32>
    %163 = arith.mulf %160, %146 : vector<2x12xf32>
    %164 = arith.mulf %159, %161 : vector<2x12xf32>
    %165 = arith.addf %163, %164 : vector<2x12xf32>
    %166 = math.tanh %165 : vector<2x12xf32>
    %167 = arith.mulf %162, %166 : vector<2x12xf32>
    %c14 = arith.constant 14 : index
    %c0_54 = arith.constant 0 : index
    %168 = vector.load %arg8[%c14, %c0_54] : memref<16x12xf32, #tpu.memory_space<vmem>>, vector<2x12xf32>
    tpu.vector_store %arg8[%c14, %c0_54], %167 {strides = array<i32>} : memref<16x12xf32, #tpu.memory_space<vmem>>, vector<2x12xf32>,
    %c0_55 = arith.constant 0 : index
    %c0_56 = arith.constant 0 : index
    %169 = vector.load %arg4[%c0_55, %c0_56] : memref<12x12xf32, #tpu.memory_space<vmem>>, vector<12x12xf32>
    %c0_57 = arith.constant 0 : index
    %c0_58 = arith.constant 0 : index
    %170 = vector.load %arg5[%c0_57, %c0_58] : memref<1x12xf32, #tpu.memory_space<vmem>>, vector<1x12xf32>
    %c0_59 = arith.constant 0 : index
    %c0_60 = arith.constant 0 : index
    %171 = tpu.strided_load %arg8[%c0_59, %c0_60] {strides = array<i32: 2, 1>} : memref<16x12xf32, #tpu.memory_space<vmem>>, vector<8x12xf32>
    %cst_61 = arith.constant dense<0.000000e+00> : vector<8x12xf32>
    %172 = tpu.matmul %171, %169, %cst_61 {dimension_numbers = #tpu.dot_dimension_numbers<[1], [0], [0], [1], [0, 0, 1, 1], [], []>} : vector<8x12xf32>, vector<12x12xf32>, vector<8x12xf32> -> vector<8x12xf32>
    %173 = vector.broadcast %170 : vector<1x12xf32> to vector<8x12xf32>
    %174 = arith.addf %172, %173 : vector<8x12xf32>
    %cst_62 = arith.constant 0.000000e+00 : f32
    %175 = vector.broadcast %cst_62 : f32 to vector<8x12xf32>
    %176 = arith.maximumf %174, %175 : vector<8x12xf32>
    %c0_63 = arith.constant 0 : index
    %c0_64 = arith.constant 0 : index
    %c0_65 = arith.constant 0 : index
    %177 = vector.load %arg6[%c0_63, %c0_64, %c0_65] : memref<2x8x12xf32, #tpu.memory_space<vmem>>, vector<1x8x12xf32>
    %178 = vector.shape_cast %177 : vector<1x8x12xf32> to vector<8x12xf32>
    %179 = vector.shape_cast %176 : vector<8x12xf32> to vector<1x8x12xf32>
    tpu.vector_store %arg6[%c0_63, %c0_64, %c0_65], %179 {strides = array<i32>} : memref<2x8x12xf32, #tpu.memory_space<vmem>>, vector<1x8x12xf32>,
    %c1_66 = arith.constant 1 : index
    %c0_67 = arith.constant 0 : index
    %180 = tpu.strided_load %arg8[%c1_66, %c0_67] {strides = array<i32: 2, 1>} : memref<16x12xf32, #tpu.memory_space<vmem>>, vector<8x12xf32>
    %cst_68 = arith.constant dense<0.000000e+00> : vector<8x12xf32>
    %181 = tpu.matmul %180, %169, %cst_68 {dimension_numbers = #tpu.dot_dimension_numbers<[1], [0], [0], [1], [0, 0, 1, 1], [], []>} : vector<8x12xf32>, vector<12x12xf32>, vector<8x12xf32> -> vector<8x12xf32>
    %182 = vector.broadcast %170 : vector<1x12xf32> to vector<8x12xf32>
    %183 = arith.addf %181, %182 : vector<8x12xf32>
    %cst_69 = arith.constant 0.000000e+00 : f32
    %184 = vector.broadcast %cst_69 : f32 to vector<8x12xf32>
    %185 = arith.maximumf %183, %184 : vector<8x12xf32>
    %c1_70 = arith.constant 1 : index
    %c0_71 = arith.constant 0 : index
    %c0_72 = arith.constant 0 : index
    %186 = vector.load %arg6[%c1_70, %c0_71, %c0_72] : memref<2x8x12xf32, #tpu.memory_space<vmem>>, vector<1x8x12xf32>
    %187 = vector.shape_cast %186 : vector<1x8x12xf32> to vector<8x12xf32>
    %188 = vector.shape_cast %185 : vector<8x12xf32> to vector<1x8x12xf32>
    tpu.vector_store %arg6[%c1_70, %c0_71, %c0_72], %188 {strides = array<i32>} : memref<2x8x12xf32, #tpu.memory_space<vmem>>, vector<1x8x12xf32>,
    return
  }
}

</mosaic_0001>

<llo_original>
// kernel: lstm_generator_forward.1
$region0: #{lstm_generator_forward.1}
  #allocation0 [shape = 'u32[]', space=smem, size = 0x4, offset = 0x4, fixed_abs, tag = 'smem constant byte address 0x4 - core index']
  #allocation1 [shape = 'u32[144,128]{1,0:T(1,128)}', space=vmem, size = 0x12000, scoped, tag = 'internal scratch']
  #allocation2 [shape = 'f32[16,48]{1,0:T(8,128)}', space=vmem, size = 0x2000, scoped, tag = 'scratch operand']
  #allocation3 [shape = 'f32[16,12]{1,0:T(8,128)}', space=vmem, size = 0x2000, scoped, tag = 'scratch operand']
  %s0 = inlined_call_operand.vmem [shape: f32[2,8,12], index: 0, kind: input, shape index: {}]
  %s1 = inlined_call_operand.vmem [shape: f32[12,48], index: 1, kind: input, shape index: {}]
  %s2 = inlined_call_operand.vmem [shape: f32[12,48], index: 2, kind: input, shape index: {}]
  %s3 = inlined_call_operand.vmem [shape: f32[1,48], index: 3, kind: input, shape index: {}]
  %s4 = inlined_call_operand.vmem [shape: f32[12,12], index: 4, kind: input, shape index: {}]
  %s5 = inlined_call_operand.vmem [shape: f32[1,12], index: 5, kind: input, shape index: {}]
  %s6 = inlined_call_operand.hbm [shape: f32[2,8,12], index: 6, kind: output, shape index: {}]
  %s7 = sld [smem:[#allocation0]]
  $region34: #{lstm_generator_forward.1} parent=0
    _
  %s9 = ssub.s32 1, %s7
  %s10 = scalar_select 0, %s9, %s7
  $region1: #{lstm_generator_forward.1} parent=0
    #allocation4 [shape = 'u8[8192]{0}', space=vmem, size = 0x2000, scoped, tag = 'output window, operand 0, single buffered']
    #allocation5 [shape = 's32[1]{0}', space=sflag, size = 0x4, scoped, tag = 'scoped memory for lstm_generator_forward.1']
    %11 = vsyncpa [#allocation5], 0
    // Predicated region
    $region2: #{lstm_generator_forward.1} parent=1 // pred_check
      _
    $region3: #{lstm_generator_forward.1} parent=1 // pred_check_branch
      %13 = sbr.rel (0) target = $region5
    $region4: #{lstm_generator_forward.1} parent=1 // pred_region
      _
    $region5: #{lstm_generator_forward.1} parent=1 // pred_fallthru
      _
    // Predicated region
    $region6: #{lstm_generator_forward.1} parent=1 // pred_check
      _
    $region7: #{lstm_generator_forward.1} parent=1 // pred_check_branch
      %15 = sbr.rel (0) target = $region9
    $region8: #{lstm_generator_forward.1} parent=1 // pred_region
      _
    $region9: #{lstm_generator_forward.1} parent=1 // pred_fallthru
      _
    // Predicated region
    $region10: #{lstm_generator_forward.1} parent=1 // pred_check
      _
    $region11: #{lstm_generator_forward.1} parent=1 // pred_check_branch
      %17 = sbr.rel (0) target = $region13
    $region12: #{lstm_generator_forward.1} parent=1 // pred_region
      _
    $region13: #{lstm_generator_forward.1} parent=1 // pred_fallthru
      _
    // Predicated region
    $region14: #{lstm_generator_forward.1} parent=1 // pred_check
      _
    $region15: #{lstm_generator_forward.1} parent=1 // pred_check_branch
      %19 = sbr.rel (0) target = $region17
    $region16: #{lstm_generator_forward.1} parent=1 // pred_region
      _
    $region17: #{lstm_generator_forward.1} parent=1 // pred_fallthru
      _
    // Predicated region
    $region18: #{lstm_generator_forward.1} parent=1 // pred_check
      _
    $region19: #{lstm_generator_forward.1} parent=1 // pred_check_branch
      %21 = sbr.rel (0) target = $region21
    $region20: #{lstm_generator_forward.1} parent=1 // pred_region
      _
    $region21: #{lstm_generator_forward.1} parent=1 // pred_fallthru
      _
    // Predicated region
    $region22: #{lstm_generator_forward.1} parent=1 // pred_check
      _
    $region23: #{lstm_generator_forward.1} parent=1 // pred_check_branch
      %23 = sbr.rel (0) target = $region25
    $region24: #{lstm_generator_forward.1} parent=1 // pred_region
      _
    $region25: #{lstm_generator_forward.1} parent=1 // pred_fallthru
      _
    %v24 = vld [vmem:[%s1] sm:$0xff]
    %v25 = vld [vmem:[%s1 + $0x8] sm:$0xf]
    %v26 = vld [vmem:[%s3] sm:$0x1]
    %v27 = vld [vmem:[%s0] sm:$0xff]
    %v29 = vlaneseq
    %v30 = vshrl.u32 %v29, 7
    %v31 = vsub.s32 0, %v30
    %v32 = vrot.slane %v26, %v31
    %vm34 = vcmask 97280
    %v36 = vsel %vm34, %v27, 0
    %vm38 = vcmask 1043456
    %v40 = vsel %vm38, %v25, 0
    %42 = vmatprep.subr.mxu0 0.0
    %43 = vmatpush1.msra.mxu0 %v24
    %44 = vmatprep.subr.mxu0 0.0
    %45 = vmatpush1.msra.mxu0 %v40
    %46 = vmatprep.subr.mxu0 0.0
    %47 = vmatpush1.msra.mxu0 0.0
    %48 = vmatprep.subr.mxu0 0.0
    %49 = vmatpush1.msra.mxu0 0.0
    %50 = vmatprep.subr.mxu0 0.0
    %51 = vmatpush1.msra.mxu0 0.0
    %52 = vmatprep.subr.mxu0 0.0
    %53 = vmatpush1.msra.mxu0 0.0
    %54 = vmatprep.subr.mxu0 0.0
    %55 = vmatpush1.msra.mxu0 0.0
    %56 = vmatprep.subr.mxu0 0.0
    %57 = vmatpush1.msra.mxu0 0.0
    %58 = vmatprep.subr.mxu0 0.0
    %59 = vmatpush1.msra.mxu0 0.0
    %60 = vmatprep.subr.mxu0 0.0
    %61 = vmatpush1.msra.mxu0 0.0
    %62 = vmatprep.subr.mxu0 0.0
    %63 = vmatpush1.msra.mxu0 0.0
    %64 = vmatprep.subr.mxu0 0.0
    %65 = vmatpush1.msra.mxu0 0.0
    %66 = vmatprep.subr.mxu0 0.0
    %67 = vmatpush1.msra.mxu0 0.0
    %68 = vmatprep.subr.mxu0 0.0
    %69 = vmatpush1.msra.mxu0 0.0
    %70 = vmatprep.subr.mxu0 0.0
    %71 = vmatpush1.msra.mxu0 0.0
    %72 = vmatprep.subr.mxu0 0.0
    %73 = vmatpush1.msra.mxu0 0.0
    %74 = vmatprep.subr.mxu0 0.0
    %75 = vmatpush1.msra.mxu0 0.0
    %76 = vmatprep.subr.mxu0 0.0
    %77 = vmatpush1.msra.mxu0 0.0
    %78 = vmatprep.subr.mxu0 0.0
    %79 = vmatpush1.msra.mxu0 0.0
    %80 = vmatprep.subr.mxu0 0.0
    %81 = vmatpush1.msra.mxu0 0.0
    %82 = vmatprep.subr.mxu0 0.0
    %83 = vmatpush1.msra.mxu0 0.0
    %84 = vmatprep.subr.mxu0 0.0
    %85 = vmatpush1.msra.mxu0 0.0
    %86 = vmatprep.subr.mxu0 0.0
    %87 = vmatpush1.msra.mxu0 0.0
    %88 = vmatprep.subr.mxu0 0.0
    %89 = vmatpush1.msra.mxu0 0.0
    %90 = vmatprep.subr.mxu0 0.0
    %91 = vmatpush1.msra.mxu0 0.0
    %92 = vmatprep.subr.mxu0 0.0
    %93 = vmatpush1.msra.mxu0 0.0
    %94 = vmatprep.subr.mxu0 0.0
    %95 = vmatpush1.msra.mxu0 0.0
    %96 = vmatprep.subr.mxu0 0.0
    %97 = vmatpush1.msra.mxu0 0.0
    %98 = vmatprep.subr.mxu0 0.0
    %99 = vmatpush1.msra.mxu0 0.0
    %100 = vmatprep.subr.mxu0 0.0
    %101 = vmatpush1.msra.mxu0 0.0
    %102 = vmatprep.subr.mxu0 0.0
    %103 = vmatpush1.msra.mxu0 0.0
    %104 = vmatprep.subr.mxu0 0.0
    %105 = vmatpush1.msra.mxu0 0.0
    %106 = vmatprep.mubr.f32.mxu0 0.0
    %107 = vmatmul.mubr.f32.gmra.mrb[0].mxu0 %v36
    %v108 = vpop.f32.mrb[0].mxu0
    %v109 = vadd.f32 %v32, %v108
    %v110 = vpop.f32.mrb[0].mxu0
    %111 = vdwg.mxu0
    %vm112 = vcmask 392192
    %113 = vst.msk [vmem:[#allocation2] sm:$0xff] %vm112, %v109
    %s114 = scalar_lea.vmem %s0, 8
    %v115 = vld [vmem:[%s114] sm:$0xff]
    %v117 = vsel %vm34, %v115, 0
    %119 = vmatprep.subr.mxu0 0.0
    %120 = vmatpush1.msra.mxu0 %v24
    %121 = vmatprep.subr.mxu0 0.0
    %122 = vmatpush1.msra.mxu0 %v40
    %123 = vmatprep.subr.mxu0 0.0
    %124 = vmatpush1.msra.mxu0 0.0
    %125 = vmatprep.subr.mxu0 0.0
    %126 = vmatpush1.msra.mxu0 0.0
    %127 = vmatprep.subr.mxu0 0.0
    %128 = vmatpush1.msra.mxu0 0.0
    %129 = vmatprep.subr.mxu0 0.0
    %130 = vmatpush1.msra.mxu0 0.0
    %131 = vmatprep.subr.mxu0 0.0
    %132 = vmatpush1.msra.mxu0 0.0
    %133 = vmatprep.subr.mxu0 0.0
    %134 = vmatpush1.msra.mxu0 0.0
    %135 = vmatprep.subr.mxu0 0.0
    %136 = vmatpush1.msra.mxu0 0.0
    %137 = vmatprep.subr.mxu0 0.0
    %138 = vmatpush1.msra.mxu0 0.0
    %139 = vmatprep.subr.mxu0 0.0
    %140 = vmatpush1.msra.mxu0 0.0
    %141 = vmatprep.subr.mxu0 0.0
    %142 = vmatpush1.msra.mxu0 0.0
    %143 = vmatprep.subr.mxu0 0.0
    %144 = vmatpush1.msra.mxu0 0.0
    %145 = vmatprep.subr.mxu0 0.0
    %146 = vmatpush1.msra.mxu0 0.0
    %147 = vmatprep.subr.mxu0 0.0
    %148 = vmatpush1.msra.mxu0 0.0
    %149 = vmatprep.subr.mxu0 0.0
    %150 = vmatpush1.msra.mxu0 0.0
    %151 = vmatprep.subr.mxu0 0.0
    %152 = vmatpush1.msra.mxu0 0.0
    %153 = vmatprep.subr.mxu0 0.0
    %154 = vmatpush1.msra.mxu0 0.0
    %155 = vmatprep.subr.mxu0 0.0
    %156 = vmatpush1.msra.mxu0 0.0
    %157 = vmatprep.subr.mxu0 0.0
    %158 = vmatpush1.msra.mxu0 0.0
    %159 = vmatprep.subr.mxu0 0.0
    %160 = vmatpush1.msra.mxu0 0.0
    %161 = vmatprep.subr.mxu0 0.0
    %162 = vmatpush1.msra.mxu0 0.0
    %163 = vmatprep.subr.mxu0 0.0
    %164 = vmatpush1.msra.mxu0 0.0
    %165 = vmatprep.subr.mxu0 0.0
    %166 = vmatpush1.msra.mxu0 0.0
    %167 = vmatprep.subr.mxu0 0.0
    %168 = vmatpush1.msra.mxu0 0.0
    %169 = vmatprep.subr.mxu0 0.0
    %170 = vmatpush1.msra.mxu0 0.0
    %171 = vmatprep.subr.mxu0 0.0
    %172 = vmatpush1.msra.mxu0 0.0
    %173 = vmatprep.subr.mxu0 0.0
    %174 = vmatpush1.msra.mxu0 0.0
    %175 = vmatprep.subr.mxu0 0.0
    %176 = vmatpush1.msra.mxu0 0.0
    %177 = vmatprep.subr.mxu0 0.0
    %178 = vmatpush1.msra.mxu0 0.0
    %179 = vmatprep.subr.mxu0 0.0
    %180 = vmatpush1.msra.mxu0 0.0
    %181 = vmatprep.subr.mxu0 0.0
    %182 = vmatpush1.msra.mxu0 0.0
    %183 = vmatprep.mubr.f32.mxu0 0.0
    %184 = vmatmul.mubr.f32.gmra.mrb[0].mxu0 %v117
    %v185 = vpop.f32.mrb[0].mxu0
    %v186 = vadd.f32 %v32, %v185
    %v187 = vpop.f32.mrb[0].mxu0
    %188 = vdwg.mxu0
    %189 = vst.msk [vmem:[#allocation2 + $0x8] sm:$0xff] %vm112, %v186
    %v190 = vld [vmem:[%s2] sm:$0xff]
    %v191 = vld [vmem:[%s2 + $0x8] sm:$0xf]
    %v192 = vld [vmem:[#allocation2] ss:$8 sm:$0x3]
    %v194 = vsel %vm34, 0.0, 0
    %v197 = vsel %vm38, %v191, 0
    %199 = vmatprep.subr.mxu0 0.0
    %200 = vmatpush1.msra.mxu0 %v190
    %201 = vmatprep.subr.mxu0 0.0
    %202 = vmatpush1.msra.mxu0 %v197
    %203 = vmatprep.subr.mxu0 0.0
    %204 = vmatpush1.msra.mxu0 0.0
    %205 = vmatprep.subr.mxu0 0.0
    %206 = vmatpush1.msra.mxu0 0.0
    %207 = vmatprep.subr.mxu0 0.0
    %208 = vmatpush1.msra.mxu0 0.0
    %209 = vmatprep.subr.mxu0 0.0
    %210 = vmatpush1.msra.mxu0 0.0
    %211 = vmatprep.subr.mxu0 0.0
    %212 = vmatpush1.msra.mxu0 0.0
    %213 = vmatprep.subr.mxu0 0.0
    %214 = vmatpush1.msra.mxu0 0.0
    %215 = vmatprep.subr.mxu0 0.0
    %216 = vmatpush1.msra.mxu0 0.0
    %217 = vmatprep.subr.mxu0 0.0
    %218 = vmatpush1.msra.mxu0 0.0
    %219 = vmatprep.subr.mxu0 0.0
    %220 = vmatpush1.msra.mxu0 0.0
    %221 = vmatprep.subr.mxu0 0.0
    %222 = vmatpush1.msra.mxu0 0.0
    %223 = vmatprep.subr.mxu0 0.0
    %224 = vmatpush1.msra.mxu0 0.0
    %225 = vmatprep.subr.mxu0 0.0
    %226 = vmatpush1.msra.mxu0 0.0
    %227 = vmatprep.subr.mxu0 0.0
    %228 = vmatpush1.msra.mxu0 0.0
    %229 = vmatprep.subr.mxu0 0.0
    %230 = vmatpush1.msra.mxu0 0.0
    %231 = vmatprep.subr.mxu0 0.0
    %232 = vmatpush1.msra.mxu0 0.0
    %233 = vmatprep.subr.mxu0 0.0
    %234 = vmatpush1.msra.mxu0 0.0
    %235 = vmatprep.subr.mxu0 0.0
    %236 = vmatpush1.msra.mxu0 0.0
    %237 = vmatprep.subr.mxu0 0.0
    %238 = vmatpush1.msra.mxu0 0.0
    %239 = vmatprep.subr.mxu0 0.0
    %240 = vmatpush1.msra.mxu0 0.0
    %241 = vmatprep.subr.mxu0 0.0
    %242 = vmatpush1.msra.mxu0 0.0
    %243 = vmatprep.subr.mxu0 0.0
    %244 = vmatpush1.msra.mxu0 0.0
    %245 = vmatprep.subr.mxu0 0.0
    %246 = vmatpush1.msra.mxu0 0.0
    %247 = vmatprep.subr.mxu0 0.0
    %248 = vmatpush1.msra.mxu0 0.0
    %249 = vmatprep.subr.mxu0 0.0
    %250 = vmatpush1.msra.mxu0 0.0
    %251 = vmatprep.subr.mxu0 0.0
    %252 = vmatpush1.msra.mxu0 0.0
    %253 = vmatprep.subr.mxu0 0.0
    %254 = vmatpush1.msra.mxu0 0.0
    %255 = vmatprep.subr.mxu0 0.0
    %256 = vmatpush1.msra.mxu0 0.0
    %257 = vmatprep.subr.mxu0 0.0
    %258 = vmatpush1.msra.mxu0 0.0
    %259 = vmatprep.subr.mxu0 0.0
    %260 = vmatpush1.msra.mxu0 0.0
    %261 = vmatprep.subr.mxu0 0.0
    %262 = vmatpush1.msra.mxu0 0.0
    %263 = vmatprep.mubr.f32.mxu0 0.0
    %264 = vmatmul.mubr.f32.gmra.mrb[0].mxu0 %v194
    %v265 = vpop.f32.mrb[0].mxu0
    %v266 = vadd.f32 0.0, %v265
    %v267 = vpop.f32.mrb[0].mxu0
    %268 = vdwg.mxu0
    %v269 = vadd.f32 %v192, %v266
    %v270 = vxor.u32 %v269, 2147483648
    %v271 = vmul.f32 %v270, 1.442695
    %v272 = vpow.pop %v271
    %v273 = vadd.f32 %v272, 1.0
    %v274 = vrcp.pop %v273
    %v275 = vmul.f32 1.0, %v274
    %v276 = vtanh.pop %v269
    %v277 = vmul.f32 %v275, 0.0
    %279 = vrot.lane.b32.xlu0 %v276, 104
    %v280 = vpop.permute.xlu0 %279
    %v282 = vmul.f32 %v275, %v280
    %284 = vrot.lane.b32.xlu0 %v282, 12
    %v285 = vpop.permute.xlu0 %284
    %v287 = vadd.f32 %v277, %v285
    %v288 = vtanh.pop %v287
    %290 = vrot.lane.b32.xlu0 %v288, 24
    %v291 = vpop.permute.xlu0 %290
    %v293 = vmul.f32 %v275, %v291
    %295 = vrot.lane.b32.xlu0 %v293, 92
    %v296 = vpop.permute.xlu0 %295
    %vm298 = vcmask 91136
    %299 = vst.msk [vmem:[#allocation3] sm:$0x3] %vm298, %v296
    %s300 = scalar_lea.vmem [#allocation2], 1
    %v301 = vld [vmem:[%s300] ss:$8 sm:$0x3]
    %v302 = vsel %vm34, %v296, 0
    %304 = vmatprep.subr.mxu0 0.0
    %305 = vmatpush1.msra.mxu0 %v190
    %306 = vmatprep.subr.mxu0 0.0
    %307 = vmatpush1.msra.mxu0 %v197
    %308 = vmatprep.subr.mxu0 0.0
    %309 = vmatpush1.msra.mxu0 0.0
    %310 = vmatprep.subr.mxu0 0.0
    %311 = vmatpush1.msra.mxu0 0.0
    %312 = vmatprep.subr.mxu0 0.0
    %313 = vmatpush1.msra.mxu0 0.0
    %314 = vmatprep.subr.mxu0 0.0
    %315 = vmatpush1.msra.mxu0 0.0
    %316 = vmatprep.subr.mxu0 0.0
    %317 = vmatpush1.msra.mxu0 0.0
    %318 = vmatprep.subr.mxu0 0.0
    %319 = vmatpush1.msra.mxu0 0.0
    %320 = vmatprep.subr.mxu0 0.0
    %321 = vmatpush1.msra.mxu0 0.0
    %322 = vmatprep.subr.mxu0 0.0
    %323 = vmatpush1.msra.mxu0 0.0
    %324 = vmatprep.subr.mxu0 0.0
    %325 = vmatpush1.msra.mxu0 0.0
    %326 = vmatprep.subr.mxu0 0.0
    %327 = vmatpush1.msra.mxu0 0.0
    %328 = vmatprep.subr.mxu0 0.0
    %329 = vmatpush1.msra.mxu0 0.0
    %330 = vmatprep.subr.mxu0 0.0
    %331 = vmatpush1.msra.mxu0 0.0
    %332 = vmatprep.subr.mxu0 0.0
    %333 = vmatpush1.msra.mxu0 0.0
    %334 = vmatprep.subr.mxu0 0.0
    %335 = vmatpush1.msra.mxu0 0.0
    %336 = vmatprep.subr.mxu0 0.0
    %337 = vmatpush1.msra.mxu0 0.0
    %338 = vmatprep.subr.mxu0 0.0
    %339 = vmatpush1.msra.mxu0 0.0
    %340 = vmatprep.subr.mxu0 0.0
    %341 = vmatpush1.msra.mxu0 0.0
    %342 = vmatprep.subr.mxu0 0.0
    %343 = vmatpush1.msra.mxu0 0.0
    %344 = vmatprep.subr.mxu0 0.0
    %345 = vmatpush1.msra.mxu0 0.0
    %346 = vmatprep.subr.mxu0 0.0
    %347 = vmatpush1.msra.mxu0 0.0
    %348 = vmatprep.subr.mxu0 0.0
    %349 = vmatpush1.msra.mxu0 0.0
    %350 = vmatprep.subr.mxu0 0.0
    %351 = vmatpush1.msra.mxu0 0.0
    %352 = vmatprep.subr.mxu0 0.0
    %353 = vmatpush1.msra.mxu0 0.0
    %354 = vmatprep.subr.mxu0 0.0
    %355 = vmatpush1.msra.mxu0 0.0
    %356 = vmatprep.subr.mxu0 0.0
    %357 = vmatpush1.msra.mxu0 0.0
    %358 = vmatprep.subr.mxu0 0.0
    %359 = vmatpush1.msra.mxu0 0.0
    %360 = vmatprep.subr.mxu0 0.0
    %361 = vmatpush1.msra.mxu0 0.0
    %362 = vmatprep.subr.mxu0 0.0
    %363 = vmatpush1.msra.mxu0 0.0
    %364 = vmatprep.subr.mxu0 0.0
    %365 = vmatpush1.msra.mxu0 0.0
    %366 = vmatprep.subr.mxu0 0.0
    %367 = vmatpush1.msra.mxu0 0.0
    %368 = vmatprep.mubr.f32.mxu0 0.0
    %369 = vmatmul.mubr.f32.gmra.mrb[0].mxu0 %v302
    %v370 = vpop.f32.mrb[0].mxu0
    %v371 = vadd.f32 0.0, %v370
    %v372 = vpop.f32.mrb[0].mxu0
    %373 = vdwg.mxu0
    %v374 = vadd.f32 %v301, %v371
    %v375 = vxor.u32 %v374, 2147483648
    %v376 = vmul.f32 %v375, 1.442695
    %v377 = vpow.pop %v376
    %v378 = vadd.f32 %v377, 1.0
    %v379 = vrcp.pop %v378
    %v380 = vmul.f32 1.0, %v379
    %v381 = vtanh.pop %v374
    %v382 = vmul.f32 %v380, %v287
    %384 = vrot.lane.b32.xlu0 %v381, 104
    %v385 = vpop.permute.xlu0 %384
    %v387 = vmul.f32 %v380, %v385
    %389 = vrot.lane.b32.xlu0 %v387, 12
    %v390 = vpop.permute.xlu0 %389
    %v392 = vadd.f32 %v382, %v390
    %v393 = vtanh.pop %v392
    %395 = vrot.lane.b32.xlu0 %v393, 24
    %v396 = vpop.permute.xlu0 %395
    %v398 = vmul.f32 %v380, %v396
    %400 = vrot.lane.b32.xlu0 %v398, 92
    %v401 = vpop.permute.xlu0 %400
    %403 = vst.msk [vmem:[#allocation3 + $0x2] sm:$0x3] %vm298, %v401
    %s404 = scalar_lea.vmem [#allocation2], 2
    %v405 = vld [vmem:[%s404] ss:$8 sm:$0x3]
    %v406 = vsel %vm34, %v401, 0
    %408 = vmatprep.subr.mxu0 0.0
    %409 = vmatpush1.msra.mxu0 %v190
    %410 = vmatprep.subr.mxu0 0.0
    %411 = vmatpush1.msra.mxu0 %v197
    %412 = vmatprep.subr.mxu0 0.0
    %413 = vmatpush1.msra.mxu0 0.0
    %414 = vmatprep.subr.mxu0 0.0
    %415 = vmatpush1.msra.mxu0 0.0
    %416 = vmatprep.subr.mxu0 0.0
    %417 = vmatpush1.msra.mxu0 0.0
    %418 = vmatprep.subr.mxu0 0.0
    %419 = vmatpush1.msra.mxu0 0.0
    %420 = vmatprep.subr.mxu0 0.0
    %421 = vmatpush1.msra.mxu0 0.0
    %422 = vmatprep.subr.mxu0 0.0
    %423 = vmatpush1.msra.mxu0 0.0
    %424 = vmatprep.subr.mxu0 0.0
    %425 = vmatpush1.msra.mxu0 0.0
    %426 = vmatprep.subr.mxu0 0.0
    %427 = vmatpush1.msra.mxu0 0.0
    %428 = vmatprep.subr.mxu0 0.0
    %429 = vmatpush1.msra.mxu0 0.0
    %430 = vmatprep.subr.mxu0 0.0
    %431 = vmatpush1.msra.mxu0 0.0
    %432 = vmatprep.subr.mxu0 0.0
    %433 = vmatpush1.msra.mxu0 0.0
    %434 = vmatprep.subr.mxu0 0.0
    %435 = vmatpush1.msra.mxu0 0.0
    %436 = vmatprep.subr.mxu0 0.0
    %437 = vmatpush1.msra.mxu0 0.0
    %438 = vmatprep.subr.mxu0 0.0
    %439 = vmatpush1.msra.mxu0 0.0
    %440 = vmatprep.subr.mxu0 0.0
    %441 = vmatpush1.msra.mxu0 0.0
    %442 = vmatprep.subr.mxu0 0.0
    %443 = vmatpush1.msra.mxu0 0.0
    %444 = vmatprep.subr.mxu0 0.0
    %445 = vmatpush1.msra.mxu0 0.0
    %446 = vmatprep.subr.mxu0 0.0
    %447 = vmatpush1.msra.mxu0 0.0
    %448 = vmatprep.subr.mxu0 0.0
    %449 = vmatpush1.msra.mxu0 0.0
    %450 = vmatprep.subr.mxu0 0.0
    %451 = vmatpush1.msra.mxu0 0.0
    %452 = vmatprep.subr.mxu0 0.0
    %453 = vmatpush1.msra.mxu0 0.0
    %454 = vmatprep.subr.mxu0 0.0
    %455 = vmatpush1.msra.mxu0 0.0
    %456 = vmatprep.subr.mxu0 0.0
    %457 = vmatpush1.msra.mxu0 0.0
    %458 = vmatprep.subr.mxu0 0.0
    %459 = vmatpush1.msra.mxu0 0.0
    %460 = vmatprep.subr.mxu0 0.0
    %461 = vmatpush1.msra.mxu0 0.0
    %462 = vmatprep.subr.mxu0 0.0
    %463 = vmatpush1.msra.mxu0 0.0
    %464 = vmatprep.subr.mxu0 0.0
    %465 = vmatpush1.msra.mxu0 0.0
    %466 = vmatprep.subr.mxu0 0.0
    %467 = vmatpush1.msra.mxu0 0.0
    %468 = vmatprep.subr.mxu0 0.0
    %469 = vmatpush1.msra.mxu0 0.0
    %470 = vmatprep.subr.mxu0 0.0
    %471 = vmatpush1.msra.mxu0 0.0
    %472 = vmatprep.mubr.f32.mxu0 0.0
    %473 = vmatmul.mubr.f32.gmra.mrb[0].mxu0 %v406
    %v474 = vpop.f32.mrb[0].mxu0
    %v475 = vadd.f32 0.0, %v474
    %v476 = vpop.f32.mrb[0].mxu0
    %477 = vdwg.mxu0
    %v478 = vadd.f32 %v405, %v475
    %v479 = vxor.u32 %v478, 2147483648
    %v480 = vmul.f32 %v479, 1.442695
    %v481 = vpow.pop %v480
    %v482 = vadd.f32 %v481, 1.0
    %v483 = vrcp.pop %v482
    %v484 = vmul.f32 1.0, %v483
    %v485 = vtanh.pop %v478
    %v486 = vmul.f32 %v484, %v392
    %488 = vrot.lane.b32.xlu0 %v485, 104
    %v489 = vpop.permute.xlu0 %488
    %v491 = vmul.f32 %v484, %v489
    %493 = vrot.lane.b32.xlu0 %v491, 12
    %v494 = vpop.permute.xlu0 %493
    %v496 = vadd.f32 %v486, %v494
    %v497 = vtanh.pop %v496
    %499 = vrot.lane.b32.xlu0 %v497, 24
    %v500 = vpop.permute.xlu0 %499
    %v502 = vmul.f32 %v484, %v500
    %504 = vrot.lane.b32.xlu0 %v502, 92
    %v505 = vpop.permute.xlu0 %504
    %507 = vst.msk [vmem:[#allocation3 + $0x4] sm:$0x3] %vm298, %v505
    %s508 = scalar_lea.vmem [#allocation2], 3
    %v509 = vld [vmem:[%s508] ss:$8 sm:$0x3]
    %v510 = vsel %vm34, %v505, 0
    %512 = vmatprep.subr.mxu0 0.0
    %513 = vmatpush1.msra.mxu0 %v190
    %514 = vmatprep.subr.mxu0 0.0
    %515 = vmatpush1.msra.mxu0 %v197
    %516 = vmatprep.subr.mxu0 0.0
    %517 = vmatpush1.msra.mxu0 0.0
    %518 = vmatprep.subr.mxu0 0.0
    %519 = vmatpush1.msra.mxu0 0.0
    %520 = vmatprep.subr.mxu0 0.0
    %521 = vmatpush1.msra.mxu0 0.0
    %522 = vmatprep.subr.mxu0 0.0
    %523 = vmatpush1.msra.mxu0 0.0
    %524 = vmatprep.subr.mxu0 0.0
    %525 = vmatpush1.msra.mxu0 0.0
    %526 = vmatprep.subr.mxu0 0.0
    %527 = vmatpush1.msra.mxu0 0.0
    %528 = vmatprep.subr.mxu0 0.0
    %529 = vmatpush1.msra.mxu0 0.0
    %530 = vmatprep.subr.mxu0 0.0
    %531 = vmatpush1.msra.mxu0 0.0
    %532 = vmatprep.subr.mxu0 0.0
    %533 = vmatpush1.msra.mxu0 0.0
    %534 = vmatprep.subr.mxu0 0.0
    %535 = vmatpush1.msra.mxu0 0.0
    %536 = vmatprep.subr.mxu0 0.0
    %537 = vmatpush1.msra.mxu0 0.0
    %538 = vmatprep.subr.mxu0 0.0
    %539 = vmatpush1.msra.mxu0 0.0
    %540 = vmatprep.subr.mxu0 0.0
    %541 = vmatpush1.msra.mxu0 0.0
    %542 = vmatprep.subr.mxu0 0.0
    %543 = vmatpush1.msra.mxu0 0.0
    %544 = vmatprep.subr.mxu0 0.0
    %545 = vmatpush1.msra.mxu0 0.0
    %546 = vmatprep.subr.mxu0 0.0
    %547 = vmatpush1.msra.mxu0 0.0
    %548 = vmatprep.subr.mxu0 0.0
    %549 = vmatpush1.msra.mxu0 0.0
    %550 = vmatprep.subr.mxu0 0.0
    %551 = vmatpush1.msra.mxu0 0.0
    %552 = vmatprep.subr.mxu0 0.0
    %553 = vmatpush1.msra.mxu0 0.0
    %554 = vmatprep.subr.mxu0 0.0
    %555 = vmatpush1.msra.mxu0 0.0
    %556 = vmatprep.subr.mxu0 0.0
    %557 = vmatpush1.msra.mxu0 0.0
    %558 = vmatprep.subr.mxu0 0.0
    %559 = vmatpush1.msra.mxu0 0.0
    %560 = vmatprep.subr.mxu0 0.0
    %561 = vmatpush1.msra.mxu0 0.0
    %562 = vmatprep.subr.mxu0 0.0
    %563 = vmatpush1.msra.mxu0 0.0
    %564 = vmatprep.subr.mxu0 0.0
    %565 = vmatpush1.msra.mxu0 0.0
    %566 = vmatprep.subr.mxu0 0.0
    %567 = vmatpush1.msra.mxu0 0.0
    %568 = vmatprep.subr.mxu0 0.0
    %569 = vmatpush1.msra.mxu0 0.0
    %570 = vmatprep.subr.mxu0 0.0
    %571 = vmatpush1.msra.mxu0 0.0
    %572 = vmatprep.subr.mxu0 0.0
    %573 = vmatpush1.msra.mxu0 0.0
    %574 = vmatprep.subr.mxu0 0.0
    %575 = vmatpush1.msra.mxu0 0.0
    %576 = vmatprep.mubr.f32.mxu0 0.0
    %577 = vmatmul.mubr.f32.gmra.mrb[0].mxu0 %v510
    %v578 = vpop.f32.mrb[0].mxu0
    %v579 = vadd.f32 0.0, %v578
    %v580 = vpop.f32.mrb[0].mxu0
    %581 = vdwg.mxu0
    %v582 = vadd.f32 %v509, %v579
    %v583 = vxor.u32 %v582, 2147483648
    %v584 = vmul.f32 %v583, 1.442695
    %v585 = vpow.pop %v584
    %v586 = vadd.f32 %v585, 1.0
    %v587 = vrcp.pop %v586
    %v588 = vmul.f32 1.0, %v587
    %v589 = vtanh.pop %v582
    %v590 = vmul.f32 %v588, %v496
    %592 = vrot.lane.b32.xlu0 %v589, 104
    %v593 = vpop.permute.xlu0 %592
    %v595 = vmul.f32 %v588, %v593
    %597 = vrot.lane.b32.xlu0 %v595, 12
    %v598 = vpop.permute.xlu0 %597
    %v600 = vadd.f32 %v590, %v598
    %v601 = vtanh.pop %v600
    %603 = vrot.lane.b32.xlu0 %v601, 24
    %v604 = vpop.permute.xlu0 %603
    %v606 = vmul.f32 %v588, %v604
    %608 = vrot.lane.b32.xlu0 %v606, 92
    %v609 = vpop.permute.xlu0 %608
    %611 = vst.msk [vmem:[#allocation3 + $0x6] sm:$0x3] %vm298, %v609
    %s612 = scalar_lea.vmem [#allocation2], 4
    %v613 = vld [vmem:[%s612] ss:$8 sm:$0x3]
    %v614 = vsel %vm34, %v609, 0
    %616 = vmatprep.subr.mxu0 0.0
    %617 = vmatpush1.msra.mxu0 %v190
    %618 = vmatprep.subr.mxu0 0.0
    %619 = vmatpush1.msra.mxu0 %v197
    %620 = vmatprep.subr.mxu0 0.0
    %621 = vmatpush1.msra.mxu0 0.0
    %622 = vmatprep.subr.mxu0 0.0
    %623 = vmatpush1.msra.mxu0 0.0
    %624 = vmatprep.subr.mxu0 0.0
    %625 = vmatpush1.msra.mxu0 0.0
    %626 = vmatprep.subr.mxu0 0.0
    %627 = vmatpush1.msra.mxu0 0.0
    %628 = vmatprep.subr.mxu0 0.0
    %629 = vmatpush1.msra.mxu0 0.0
    %630 = vmatprep.subr.mxu0 0.0
    %631 = vmatpush1.msra.mxu0 0.0
    %632 = vmatprep.subr.mxu0 0.0
    %633 = vmatpush1.msra.mxu0 0.0
    %634 = vmatprep.subr.mxu0 0.0
    %635 = vmatpush1.msra.mxu0 0.0
    %636 = vmatprep.subr.mxu0 0.0
    %637 = vmatpush1.msra.mxu0 0.0
    %638 = vmatprep.subr.mxu0 0.0
    %639 = vmatpush1.msra.mxu0 0.0
    %640 = vmatprep.subr.mxu0 0.0
    %641 = vmatpush1.msra.mxu0 0.0
    %642 = vmatprep.subr.mxu0 0.0
    %643 = vmatpush1.msra.mxu0 0.0
    %644 = vmatprep.subr.mxu0 0.0
    %645 = vmatpush1.msra.mxu0 0.0
    %646 = vmatprep.subr.mxu0 0.0
    %647 = vmatpush1.msra.mxu0 0.0
    %648 = vmatprep.subr.mxu0 0.0
    %649 = vmatpush1.msra.mxu0 0.0
    %650 = vmatprep.subr.mxu0 0.0
    %651 = vmatpush1.msra.mxu0 0.0
    %652 = vmatprep.subr.mxu0 0.0
    %653 = vmatpush1.msra.mxu0 0.0
    %654 = vmatprep.subr.mxu0 0.0
    %655 = vmatpush1.msra.mxu0 0.0
    %656 = vmatprep.subr.mxu0 0.0
    %657 = vmatpush1.msra.mxu0 0.0
    %658 = vmatprep.subr.mxu0 0.0
    %659 = vmatpush1.msra.mxu0 0.0
    %660 = vmatprep.subr.mxu0 0.0
    %661 = vmatpush1.msra.mxu0 0.0
    %662 = vmatprep.subr.mxu0 0.0
    %663 = vmatpush1.msra.mxu0 0.0
    %664 = vmatprep.subr.mxu0 0.0
    %665 = vmatpush1.msra.mxu0 0.0
    %666 = vmatprep.subr.mxu0 0.0
    %667 = vmatpush1.msra.mxu0 0.0
    %668 = vmatprep.subr.mxu0 0.0
    %669 = vmatpush1.msra.mxu0 0.0
    %670 = vmatprep.subr.mxu0 0.0
    %671 = vmatpush1.msra.mxu0 0.0
    %672 = vmatprep.subr.mxu0 0.0
    %673 = vmatpush1.msra.mxu0 0.0
    %674 = vmatprep.subr.mxu0 0.0
    %675 = vmatpush1.msra.mxu0 0.0
    %676 = vmatprep.subr.mxu0 0.0
    %677 = vmatpush1.msra.mxu0 0.0
    %678 = vmatprep.subr.mxu0 0.0
    %679 = vmatpush1.msra.mxu0 0.0
    %680 = vmatprep.mubr.f32.mxu0 0.0
    %681 = vmatmul.mubr.f32.gmra.mrb[0].mxu0 %v614
    %v682 = vpop.f32.mrb[0].mxu0
    %v683 = vadd.f32 0.0, %v682
    %v684 = vpop.f32.mrb[0].mxu0
    %685 = vdwg.mxu0
    %v686 = vadd.f32 %v613, %v683
    %v687 = vxor.u32 %v686, 2147483648
    %v688 = vmul.f32 %v687, 1.442695
    %v689 = vpow.pop %v688
    %v690 = vadd.f32 %v689, 1.0
    %v691 = vrcp.pop %v690
    %v692 = vmul.f32 1.0, %v691
    %v693 = vtanh.pop %v686
    %v694 = vmul.f32 %v692, %v600
    %696 = vrot.lane.b32.xlu0 %v693, 104
    %v697 = vpop.permute.xlu0 %696
    %v699 = vmul.f32 %v692, %v697
    %701 = vrot.lane.b32.xlu0 %v699, 12
    %v702 = vpop.permute.xlu0 %701
    %v704 = vadd.f32 %v694, %v702
    %v705 = vtanh.pop %v704
    %707 = vrot.lane.b32.xlu0 %v705, 24
    %v708 = vpop.permute.xlu0 %707
    %v710 = vmul.f32 %v692, %v708
    %712 = vrot.lane.b32.xlu0 %v710, 92
    %v713 = vpop.permute.xlu0 %712
    %715 = vst.msk [vmem:[#allocation3 + $0x8] sm:$0x3] %vm298, %v713
    %s716 = scalar_lea.vmem [#allocation2], 5
    %v717 = vld [vmem:[%s716] ss:$8 sm:$0x3]
    %v718 = vsel %vm34, %v713, 0
    %720 = vmatprep.subr.mxu0 0.0
    %721 = vmatpush1.msra.mxu0 %v190
    %722 = vmatprep.subr.mxu0 0.0
    %723 = vmatpush1.msra.mxu0 %v197
    %724 = vmatprep.subr.mxu0 0.0
    %725 = vmatpush1.msra.mxu0 0.0
    %726 = vmatprep.subr.mxu0 0.0
    %727 = vmatpush1.msra.mxu0 0.0
    %728 = vmatprep.subr.mxu0 0.0
    %729 = vmatpush1.msra.mxu0 0.0
    %730 = vmatprep.subr.mxu0 0.0
    %731 = vmatpush1.msra.mxu0 0.0
    %732 = vmatprep.subr.mxu0 0.0
    %733 = vmatpush1.msra.mxu0 0.0
    %734 = vmatprep.subr.mxu0 0.0
    %735 = vmatpush1.msra.mxu0 0.0
    %736 = vmatprep.subr.mxu0 0.0
    %737 = vmatpush1.msra.mxu0 0.0
    %738 = vmatprep.subr.mxu0 0.0
    %739 = vmatpush1.msra.mxu0 0.0
    %740 = vmatprep.subr.mxu0 0.0
    %741 = vmatpush1.msra.mxu0 0.0
    %742 = vmatprep.subr.mxu0 0.0
    %743 = vmatpush1.msra.mxu0 0.0
    %744 = vmatprep.subr.mxu0 0.0
    %745 = vmatpush1.msra.mxu0 0.0
    %746 = vmatprep.subr.mxu0 0.0
    %747 = vmatpush1.msra.mxu0 0.0
    %748 = vmatprep.subr.mxu0 0.0
    %749 = vmatpush1.msra.mxu0 0.0
    %750 = vmatprep.subr.mxu0 0.0
    %751 = vmatpush1.msra.mxu0 0.0
    %752 = vmatprep.subr.mxu0 0.0
    %753 = vmatpush1.msra.mxu0 0.0
    %754 = vmatprep.subr.mxu0 0.0
    %755 = vmatpush1.msra.mxu0 0.0
    %756 = vmatprep.subr.mxu0 0.0
    %757 = vmatpush1.msra.mxu0 0.0
    %758 = vmatprep.subr.mxu0 0.0
    %759 = vmatpush1.msra.mxu0 0.0
    %760 = vmatprep.subr.mxu0 0.0
    %761 = vmatpush1.msra.mxu0 0.0
    %762 = vmatprep.subr.mxu0 0.0
    %763 = vmatpush1.msra.mxu0 0.0
    %764 = vmatprep.subr.mxu0 0.0
    %765 = vmatpush1.msra.mxu0 0.0
    %766 = vmatprep.subr.mxu0 0.0
    %767 = vmatpush1.msra.mxu0 0.0
    %768 = vmatprep.subr.mxu0 0.0
    %769 = vmatpush1.msra.mxu0 0.0
    %770 = vmatprep.subr.mxu0 0.0
    %771 = vmatpush1.msra.mxu0 0.0
    %772 = vmatprep.subr.mxu0 0.0
    %773 = vmatpush1.msra.mxu0 0.0
    %774 = vmatprep.subr.mxu0 0.0
    %775 = vmatpush1.msra.mxu0 0.0
    %776 = vmatprep.subr.mxu0 0.0
    %777 = vmatpush1.msra.mxu0 0.0
    %778 = vmatprep.subr.mxu0 0.0
    %779 = vmatpush1.msra.mxu0 0.0
    %780 = vmatprep.subr.mxu0 0.0
    %781 = vmatpush1.msra.mxu0 0.0
    %782 = vmatprep.subr.mxu0 0.0
    %783 = vmatpush1.msra.mxu0 0.0
    %784 = vmatprep.mubr.f32.mxu0 0.0
    %785 = vmatmul.mubr.f32.gmra.mrb[0].mxu0 %v718
    %v786 = vpop.f32.mrb[0].mxu0
    %v787 = vadd.f32 0.0, %v786
    %v788 = vpop.f32.mrb[0].mxu0
    %789 = vdwg.mxu0
    %v790 = vadd.f32 %v717, %v787
    %v791 = vxor.u32 %v790, 2147483648
    %v792 = vmul.f32 %v791, 1.442695
    %v793 = vpow.pop %v792
    %v794 = vadd.f32 %v793, 1.0
    %v795 = vrcp.pop %v794
    %v796 = vmul.f32 1.0, %v795
    %v797 = vtanh.pop %v790
    %v798 = vmul.f32 %v796, %v704
    %800 = vrot.lane.b32.xlu0 %v797, 104
    %v801 = vpop.permute.xlu0 %800
    %v803 = vmul.f32 %v796, %v801
    %805 = vrot.lane.b32.xlu0 %v803, 12
    %v806 = vpop.permute.xlu0 %805
    %v808 = vadd.f32 %v798, %v806
    %v809 = vtanh.pop %v808
    %811 = vrot.lane.b32.xlu0 %v809, 24
    %v812 = vpop.permute.xlu0 %811
    %v814 = vmul.f32 %v796, %v812
    %816 = vrot.lane.b32.xlu0 %v814, 92
    %v817 = vpop.permute.xlu0 %816
    %819 = vst.msk [vmem:[#allocation3 + $0xa] sm:$0x3] %vm298, %v817
    %s820 = scalar_lea.vmem [#allocation2], 6
    %v821 = vld [vmem:[%s820] ss:$8 sm:$0x3]
    %v822 = vsel %vm34, %v817, 0
    %824 = vmatprep.subr.mxu0 0.0
    %825 = vmatpush1.msra.mxu0 %v190
    %826 = vmatprep.subr.mxu0 0.0
    %827 = vmatpush1.msra.mxu0 %v197
    %828 = vmatprep.subr.mxu0 0.0
    %829 = vmatpush1.msra.mxu0 0.0
    %830 = vmatprep.subr.mxu0 0.0
    %831 = vmatpush1.msra.mxu0 0.0
    %832 = vmatprep.subr.mxu0 0.0
    %833 = vmatpush1.msra.mxu0 0.0
    %834 = vmatprep.subr.mxu0 0.0
    %835 = vmatpush1.msra.mxu0 0.0
    %836 = vmatprep.subr.mxu0 0.0
    %837 = vmatpush1.msra.mxu0 0.0
    %838 = vmatprep.subr.mxu0 0.0
    %839 = vmatpush1.msra.mxu0 0.0
    %840 = vmatprep.subr.mxu0 0.0
    %841 = vmatpush1.msra.mxu0 0.0
    %842 = vmatprep.subr.mxu0 0.0
    %843 = vmatpush1.msra.mxu0 0.0
    %844 = vmatprep.subr.mxu0 0.0
    %845 = vmatpush1.msra.mxu0 0.0
    %846 = vmatprep.subr.mxu0 0.0
    %847 = vmatpush1.msra.mxu0 0.0
    %848 = vmatprep.subr.mxu0 0.0
    %849 = vmatpush1.msra.mxu0 0.0
    %850 = vmatprep.subr.mxu0 0.0
    %851 = vmatpush1.msra.mxu0 0.0
    %852 = vmatprep.subr.mxu0 0.0
    %853 = vmatpush1.msra.mxu0 0.0
    %854 = vmatprep.subr.mxu0 0.0
    %855 = vmatpush1.msra.mxu0 0.0
    %856 = vmatprep.subr.mxu0 0.0
    %857 = vmatpush1.msra.mxu0 0.0
    %858 = vmatprep.subr.mxu0 0.0
    %859 = vmatpush1.msra.mxu0 0.0
    %860 = vmatprep.subr.mxu0 0.0
    %861 = vmatpush1.msra.mxu0 0.0
    %862 = vmatprep.subr.mxu0 0.0
    %863 = vmatpush1.msra.mxu0 0.0
    %864 = vmatprep.subr.mxu0 0.0
    %865 = vmatpush1.msra.mxu0 0.0
    %866 = vmatprep.subr.mxu0 0.0
    %867 = vmatpush1.msra.mxu0 0.0
    %868 = vmatprep.subr.mxu0 0.0
    %869 = vmatpush1.msra.mxu0 0.0
    %870 = vmatprep.subr.mxu0 0.0
    %871 = vmatpush1.msra.mxu0 0.0
    %872 = vmatprep.subr.mxu0 0.0
    %873 = vmatpush1.msra.mxu0 0.0
    %874 = vmatprep.subr.mxu0 0.0
    %875 = vmatpush1.msra.mxu0 0.0
    %876 = vmatprep.subr.mxu0 0.0
    %877 = vmatpush1.msra.mxu0 0.0
    %878 = vmatprep.subr.mxu0 0.0
    %879 = vmatpush1.msra.mxu0 0.0
    %880 = vmatprep.subr.mxu0 0.0
    %881 = vmatpush1.msra.mxu0 0.0
    %882 = vmatprep.subr.mxu0 0.0
    %883 = vmatpush1.msra.mxu0 0.0
    %884 = vmatprep.subr.mxu0 0.0
    %885 = vmatpush1.msra.mxu0 0.0
    %886 = vmatprep.subr.mxu0 0.0
    %887 = vmatpush1.msra.mxu0 0.0
    %888 = vmatprep.mubr.f32.mxu0 0.0
    %889 = vmatmul.mubr.f32.gmra.mrb[0].mxu0 %v822
    %v890 = vpop.f32.mrb[0].mxu0
    %v891 = vadd.f32 0.0, %v890
    %v892 = vpop.f32.mrb[0].mxu0
    %893 = vdwg.mxu0
    %v894 = vadd.f32 %v821, %v891
    %v895 = vxor.u32 %v894, 2147483648
    %v896 = vmul.f32 %v895, 1.442695
    %v897 = vpow.pop %v896
    %v898 = vadd.f32 %v897, 1.0
    %v899 = vrcp.pop %v898
    %v900 = vmul.f32 1.0, %v899
    %v901 = vtanh.pop %v894
    %v902 = vmul.f32 %v900, %v808
    %904 = vrot.lane.b32.xlu0 %v901, 104
    %v905 = vpop.permute.xlu0 %904
    %v907 = vmul.f32 %v900, %v905
    %909 = vrot.lane.b32.xlu0 %v907, 12
    %v910 = vpop.permute.xlu0 %909
    %v912 = vadd.f32 %v902, %v910
    %v913 = vtanh.pop %v912
    %915 = vrot.lane.b32.xlu0 %v913, 24
    %v916 = vpop.permute.xlu0 %915
    %v918 = vmul.f32 %v900, %v916
    %920 = vrot.lane.b32.xlu0 %v918, 92
    %v921 = vpop.permute.xlu0 %920
    %923 = vst.msk [vmem:[#allocation3 + $0xc] sm:$0x3] %vm298, %v921
    %s924 = scalar_lea.vmem [#allocation2], 7
    %v925 = vld [vmem:[%s924] ss:$8 sm:$0x3]
    %v926 = vsel %vm34, %v921, 0
    %928 = vmatprep.subr.mxu0 0.0
    %929 = vmatpush1.msra.mxu0 %v190
    %930 = vmatprep.subr.mxu0 0.0
    %931 = vmatpush1.msra.mxu0 %v197
    %932 = vmatprep.subr.mxu0 0.0
    %933 = vmatpush1.msra.mxu0 0.0
    %934 = vmatprep.subr.mxu0 0.0
    %935 = vmatpush1.msra.mxu0 0.0
    %936 = vmatprep.subr.mxu0 0.0
    %937 = vmatpush1.msra.mxu0 0.0
    %938 = vmatprep.subr.mxu0 0.0
    %939 = vmatpush1.msra.mxu0 0.0
    %940 = vmatprep.subr.mxu0 0.0
    %941 = vmatpush1.msra.mxu0 0.0
    %942 = vmatprep.subr.mxu0 0.0
    %943 = vmatpush1.msra.mxu0 0.0
    %944 = vmatprep.subr.mxu0 0.0
    %945 = vmatpush1.msra.mxu0 0.0
    %946 = vmatprep.subr.mxu0 0.0
    %947 = vmatpush1.msra.mxu0 0.0
    %948 = vmatprep.subr.mxu0 0.0
    %949 = vmatpush1.msra.mxu0 0.0
    %950 = vmatprep.subr.mxu0 0.0
    %951 = vmatpush1.msra.mxu0 0.0
    %952 = vmatprep.subr.mxu0 0.0
    %953 = vmatpush1.msra.mxu0 0.0
    %954 = vmatprep.subr.mxu0 0.0
    %955 = vmatpush1.msra.mxu0 0.0
    %956 = vmatprep.subr.mxu0 0.0
    %957 = vmatpush1.msra.mxu0 0.0
    %958 = vmatprep.subr.mxu0 0.0
    %959 = vmatpush1.msra.mxu0 0.0
    %960 = vmatprep.subr.mxu0 0.0
    %961 = vmatpush1.msra.mxu0 0.0
    %962 = vmatprep.subr.mxu0 0.0
    %963 = vmatpush1.msra.mxu0 0.0
    %964 = vmatprep.subr.mxu0 0.0
    %965 = vmatpush1.msra.mxu0 0.0
    %966 = vmatprep.subr.mxu0 0.0
    %967 = vmatpush1.msra.mxu0 0.0
    %968 = vmatprep.subr.mxu0 0.0
    %969 = vmatpush1.msra.mxu0 0.0
    %970 = vmatprep.subr.mxu0 0.0
    %971 = vmatpush1.msra.mxu0 0.0
    %972 = vmatprep.subr.mxu0 0.0
    %973 = vmatpush1.msra.mxu0 0.0
    %974 = vmatprep.subr.mxu0 0.0
    %975 = vmatpush1.msra.mxu0 0.0
    %976 = vmatprep.subr.mxu0 0.0
    %977 = vmatpush1.msra.mxu0 0.0
    %978 = vmatprep.subr.mxu0 0.0
    %979 = vmatpush1.msra.mxu0 0.0
    %980 = vmatprep.subr.mxu0 0.0
    %981 = vmatpush1.msra.mxu0 0.0
    %982 = vmatprep.subr.mxu0 0.0
    %983 = vmatpush1.msra.mxu0 0.0
    %984 = vmatprep.subr.mxu0 0.0
    %985 = vmatpush1.msra.mxu0 0.0
    %986 = vmatprep.subr.mxu0 0.0
    %987 = vmatpush1.msra.mxu0 0.0
    %988 = vmatprep.subr.mxu0 0.0
    %989 = vmatpush1.msra.mxu0 0.0
    %990 = vmatprep.subr.mxu0 0.0
    %991 = vmatpush1.msra.mxu0 0.0
    %992 = vmatprep.mubr.f32.mxu0 0.0
    %993 = vmatmul.mubr.f32.gmra.mrb[0].mxu0 %v926
    %v994 = vpop.f32.mrb[0].mxu0
    %v995 = vadd.f32 0.0, %v994
    %v996 = vpop.f32.mrb[0].mxu0
    %997 = vdwg.mxu0
    %v998 = vadd.f32 %v925, %v995
    %v999 = vxor.u32 %v998, 2147483648
    %v1000 = vmul.f32 %v999, 1.442695
    %v1001 = vpow.pop %v1000
    %v1002 = vadd.f32 %v1001, 1.0
    %v1003 = vrcp.pop %v1002
    %v1004 = vmul.f32 1.0, %v1003
    %v1005 = vtanh.pop %v998
    %v1006 = vmul.f32 %v1004, %v912
    %1008 = vrot.lane.b32.xlu0 %v1005, 104
    %v1009 = vpop.permute.xlu0 %1008
    %v1011 = vmul.f32 %v1004, %v1009
    %1013 = vrot.lane.b32.xlu0 %v1011, 12
    %v1014 = vpop.permute.xlu0 %1013
    %v1016 = vadd.f32 %v1006, %v1014
    %v1017 = vtanh.pop %v1016
    %1019 = vrot.lane.b32.xlu0 %v1017, 24
    %v1020 = vpop.permute.xlu0 %1019
    %v1022 = vmul.f32 %v1004, %v1020
    %1024 = vrot.lane.b32.xlu0 %v1022, 92
    %v1025 = vpop.permute.xlu0 %1024
    %1027 = vst.msk [vmem:[#allocation3 + $0xe] sm:$0x3] %vm298, %v1025
    %v1028 = vld [vmem:[%s4] sm:$0xff]
    %v1029 = vld [vmem:[%s4 + $0x8] sm:$0xf]
    %v1030 = vld [vmem:[%s5] sm:$0x1]
    %v1031 = vld [vmem:[#allocation3] ss:$2 sm:$0xff]
    %v1033 = vlaneseq
    %v1034 = vshrl.u32 %v1033, 7
    %v1035 = vsub.s32 0, %v1034
    %v1036 = vrot.slane %v1030, %v1035
    %v1039 = vsel %vm34, %v1031, 0
    %v1042 = vsel %vm38, %v1029, 0
    %1044 = vmatprep.subr.mxu0 0.0
    %1045 = vmatpush1.msra.mxu0 %v1028
    %1046 = vmatprep.subr.mxu0 0.0
    %1047 = vmatpush1.msra.mxu0 %v1042
    %1048 = vmatprep.subr.mxu0 0.0
    %1049 = vmatpush1.msra.mxu0 0.0
    %1050 = vmatprep.subr.mxu0 0.0
    %1051 = vmatpush1.msra.mxu0 0.0
    %1052 = vmatprep.subr.mxu0 0.0
    %1053 = vmatpush1.msra.mxu0 0.0
    %1054 = vmatprep.subr.mxu0 0.0
    %1055 = vmatpush1.msra.mxu0 0.0
    %1056 = vmatprep.subr.mxu0 0.0
    %1057 = vmatpush1.msra.mxu0 0.0
    %1058 = vmatprep.subr.mxu0 0.0
    %1059 = vmatpush1.msra.mxu0 0.0
    %1060 = vmatprep.subr.mxu0 0.0
    %1061 = vmatpush1.msra.mxu0 0.0
    %1062 = vmatprep.subr.mxu0 0.0
    %1063 = vmatpush1.msra.mxu0 0.0
    %1064 = vmatprep.subr.mxu0 0.0
    %1065 = vmatpush1.msra.mxu0 0.0
    %1066 = vmatprep.subr.mxu0 0.0
    %1067 = vmatpush1.msra.mxu0 0.0
    %1068 = vmatprep.subr.mxu0 0.0
    %1069 = vmatpush1.msra.mxu0 0.0
    %1070 = vmatprep.subr.mxu0 0.0
    %1071 = vmatpush1.msra.mxu0 0.0
    %1072 = vmatprep.subr.mxu0 0.0
    %1073 = vmatpush1.msra.mxu0 0.0
    %1074 = vmatprep.subr.mxu0 0.0
    %1075 = vmatpush1.msra.mxu0 0.0
    %1076 = vmatprep.subr.mxu0 0.0
    %1077 = vmatpush1.msra.mxu0 0.0
    %1078 = vmatprep.subr.mxu0 0.0
    %1079 = vmatpush1.msra.mxu0 0.0
    %1080 = vmatprep.subr.mxu0 0.0
    %1081 = vmatpush1.msra.mxu0 0.0
    %1082 = vmatprep.subr.mxu0 0.0
    %1083 = vmatpush1.msra.mxu0 0.0
    %1084 = vmatprep.subr.mxu0 0.0
    %1085 = vmatpush1.msra.mxu0 0.0
    %1086 = vmatprep.subr.mxu0 0.0
    %1087 = vmatpush1.msra.mxu0 0.0
    %1088 = vmatprep.subr.mxu0 0.0
    %1089 = vmatpush1.msra.mxu0 0.0
    %1090 = vmatprep.subr.mxu0 0.0
    %1091 = vmatpush1.msra.mxu0 0.0
    %1092 = vmatprep.subr.mxu0 0.0
    %1093 = vmatpush1.msra.mxu0 0.0
    %1094 = vmatprep.subr.mxu0 0.0
    %1095 = vmatpush1.msra.mxu0 0.0
    %1096 = vmatprep.subr.mxu0 0.0
    %1097 = vmatpush1.msra.mxu0 0.0
    %1098 = vmatprep.subr.mxu0 0.0
    %1099 = vmatpush1.msra.mxu0 0.0
    %1100 = vmatprep.subr.mxu0 0.0
    %1101 = vmatpush1.msra.mxu0 0.0
    %1102 = vmatprep.subr.mxu0 0.0
    %1103 = vmatpush1.msra.mxu0 0.0
    %1104 = vmatprep.subr.mxu0 0.0
    %1105 = vmatpush1.msra.mxu0 0.0
    %1106 = vmatprep.subr.mxu0 0.0
    %1107 = vmatpush1.msra.mxu0 0.0
    %1108 = vmatprep.mubr.f32.mxu0 0.0
    %1109 = vmatmul.mubr.f32.gmra.mrb[0].mxu0 %v1039
    %v1110 = vpop.f32.mrb[0].mxu0
    %v1111 = vadd.f32 %v1036, %v1110
    %v1112 = vpop.f32.mrb[0].mxu0
    %1113 = vdwg.mxu0
    %v1114 = vmax.f32 %v1111, 0.0
    %1115 = vst.msk [vmem:[#allocation4] sm:$0xff] %vm34, %v1114
    %s1116 = scalar_lea.vmem [#allocation3], 1
    %v1117 = vld [vmem:[%s1116] ss:$2 sm:$0xff]
    %v1119 = vsel %vm34, %v1117, 0
    %1121 = vmatprep.subr.mxu0 0.0
    %1122 = vmatpush1.msra.mxu0 %v1028
    %1123 = vmatprep.subr.mxu0 0.0
    %1124 = vmatpush1.msra.mxu0 %v1042
    %1125 = vmatprep.subr.mxu0 0.0
    %1126 = vmatpush1.msra.mxu0 0.0
    %1127 = vmatprep.subr.mxu0 0.0
    %1128 = vmatpush1.msra.mxu0 0.0
    %1129 = vmatprep.subr.mxu0 0.0
    %1130 = vmatpush1.msra.mxu0 0.0
    %1131 = vmatprep.subr.mxu0 0.0
    %1132 = vmatpush1.msra.mxu0 0.0
    %1133 = vmatprep.subr.mxu0 0.0
    %1134 = vmatpush1.msra.mxu0 0.0
    %1135 = vmatprep.subr.mxu0 0.0
    %1136 = vmatpush1.msra.mxu0 0.0
    %1137 = vmatprep.subr.mxu0 0.0
    %1138 = vmatpush1.msra.mxu0 0.0
    %1139 = vmatprep.subr.mxu0 0.0
    %1140 = vmatpush1.msra.mxu0 0.0
    %1141 = vmatprep.subr.mxu0 0.0
    %1142 = vmatpush1.msra.mxu0 0.0
    %1143 = vmatprep.subr.mxu0 0.0
    %1144 = vmatpush1.msra.mxu0 0.0
    %1145 = vmatprep.subr.mxu0 0.0
    %1146 = vmatpush1.msra.mxu0 0.0
    %1147 = vmatprep.subr.mxu0 0.0
    %1148 = vmatpush1.msra.mxu0 0.0
    %1149 = vmatprep.subr.mxu0 0.0
    %1150 = vmatpush1.msra.mxu0 0.0
    %1151 = vmatprep.subr.mxu0 0.0
    %1152 = vmatpush1.msra.mxu0 0.0
    %1153 = vmatprep.subr.mxu0 0.0
    %1154 = vmatpush1.msra.mxu0 0.0
    %1155 = vmatprep.subr.mxu0 0.0
    %1156 = vmatpush1.msra.mxu0 0.0
    %1157 = vmatprep.subr.mxu0 0.0
    %1158 = vmatpush1.msra.mxu0 0.0
    %1159 = vmatprep.subr.mxu0 0.0
    %1160 = vmatpush1.msra.mxu0 0.0
    %1161 = vmatprep.subr.mxu0 0.0
    %1162 = vmatpush1.msra.mxu0 0.0
    %1163 = vmatprep.subr.mxu0 0.0
    %1164 = vmatpush1.msra.mxu0 0.0
    %1165 = vmatprep.subr.mxu0 0.0
    %1166 = vmatpush1.msra.mxu0 0.0
    %1167 = vmatprep.subr.mxu0 0.0
    %1168 = vmatpush1.msra.mxu0 0.0
    %1169 = vmatprep.subr.mxu0 0.0
    %1170 = vmatpush1.msra.mxu0 0.0
    %1171 = vmatprep.subr.mxu0 0.0
    %1172 = vmatpush1.msra.mxu0 0.0
    %1173 = vmatprep.subr.mxu0 0.0
    %1174 = vmatpush1.msra.mxu0 0.0
    %1175 = vmatprep.subr.mxu0 0.0
    %1176 = vmatpush1.msra.mxu0 0.0
    %1177 = vmatprep.subr.mxu0 0.0
    %1178 = vmatpush1.msra.mxu0 0.0
    %1179 = vmatprep.subr.mxu0 0.0
    %1180 = vmatpush1.msra.mxu0 0.0
    %1181 = vmatprep.subr.mxu0 0.0
    %1182 = vmatpush1.msra.mxu0 0.0
    %1183 = vmatprep.subr.mxu0 0.0
    %1184 = vmatpush1.msra.mxu0 0.0
    %1185 = vmatprep.mubr.f32.mxu0 0.0
    %1186 = vmatmul.mubr.f32.gmra.mrb[0].mxu0 %v1119
    %v1187 = vpop.f32.mrb[0].mxu0
    %v1188 = vadd.f32 %v1036, %v1187
    %v1189 = vpop.f32.mrb[0].mxu0
    %1190 = vdwg.mxu0
    %v1191 = vmax.f32 %v1188, 0.0
    %s1192 = scalar_lea.vmem [#allocation4], 8
    %1193 = vst.msk [vmem:[%s1192] sm:$0xff] %vm34, %v1191
    // Predicated region
    $region26: #{lstm_generator_forward.1} parent=1 // pred_check
      _
    $region27: #{lstm_generator_forward.1} parent=1 // pred_check_branch
      %1195 = sbr.rel (0) target = $region29
    $region28: #{lstm_generator_forward.1} parent=1 // pred_region
      %s1197 = ssub.s32 256, 256
      %1198 = vsyncadd [#allocation5], %s1197
      %s1199 = sshll.u32 [#allocation4], 4
      %s1200 = int_to_ptr.vmem [resolvable:$true] %s1199
      %1205 = dma.vmem_to_hbm [thread:$0]  %s1200, 256, %s6, [#allocation5], 128, 128, 8
    $region29: #{lstm_generator_forward.1} parent=1 // pred_fallthru
      _
    // Predicated region
    $region30: #{lstm_generator_forward.1} parent=1 // pred_check
      _
    $region31: #{lstm_generator_forward.1} parent=1 // pred_check_branch
      %1207 = sbr.rel (0) target = $region33
    $region32: #{lstm_generator_forward.1} parent=1 // pred_region
      %1208 = dma.done [#allocation5], 256
    $region33: #{lstm_generator_forward.1} parent=1 // pred_fallthru
      _
    %1209 = vsyncpa [#allocation5], 1

</llo_original>
